<compile_context>
chip_gen: v5e
topology: v5e:2x2
jax: 0.10.0
libtpu: 0.0.40
codegen_flags: <defaults>
</compile_context>

<pallas_src>
import functools
import math

import jax
import jax.numpy as jnp
from jax import lax
from jax.experimental import pallas as pl
from jax.experimental.pallas import tpu as pltpu

VMEM_LIMIT = 40 * 1024 * 1024   # explicit scoped-VMEM budget (fits v5e/v6e/v7x)
NEG_INF = -1e30


def _pick_tile(n, pref, align):
    """Largest power-of-two-scaled tile <= pref that divides n and respects the
    (sublane=8 / lane=128) alignment; falls back to the full dimension."""
    t = pref
    while t >= align:
        if n % t == 0:
            return t
        t //= 2
    return n


# ----------------------- fused RMSNorm + linear kernel ----------------------

def _norm_matmul_kernel(x_ref, g_ref, w_ref, o_ref, *, eps):
    x = x_ref[...]                                        # (tm, D) fp32
    var = jnp.mean(x * x, axis=-1, keepdims=True)
    xn = (x * lax.rsqrt(var + eps) * g_ref[...]).astype(jnp.bfloat16)
    o_ref[...] = jnp.dot(xn, w_ref[...],
                         preferred_element_type=jnp.float32)


def norm_linear(x2d, g, w_t, eps, *, tm_pref=256, tn_pref=256):
    """rmsnorm(x) @ w_t.  x2d: (M, D) fp32; g: (1, D) fp32; w_t: (D, N) bf16."""
    M, D = x2d.shape
    N = w_t.shape[1]
    tm = _pick_tile(M, tm_pref, 8)
    tn = _pick_tile(N, tn_pref, 128)
    grid = (M // tm, N // tn)
    return pl.pallas_call(
        functools.partial(_norm_matmul_kernel, eps=eps),
        out_shape=jax.ShapeDtypeStruct((M, N), jnp.float32),
        grid=grid,
        in_specs=[pl.BlockSpec((tm, D), lambda i, j: (i, 0)),
                  pl.BlockSpec((1, D), lambda i, j: (0, 0)),
                  pl.BlockSpec((D, tn), lambda i, j: (0, j))],
        out_specs=pl.BlockSpec((tm, tn), lambda i, j: (i, j)),
        compiler_params=pltpu.CompilerParams(
            dimension_semantics=("parallel", "parallel"),
            vmem_limit_bytes=VMEM_LIMIT),
    )(x2d, g, w_t)


# ------------------ K-tiled matmul fused with residual add ------------------

def _matmul_residual_kernel(x_ref, w_ref, r_ref, o_ref, acc_ref):
    k = pl.program_id(2)

    @pl.when(k == 0)
    def _():
        acc_ref[...] = jnp.zeros_like(acc_ref)

    acc_ref[...] += jnp.dot(x_ref[...].astype(jnp.bfloat16), w_ref[...],
                            preferred_element_type=jnp.float32)

    @pl.when(k == pl.num_programs(2) - 1)
    def _():
        o_ref[...] = acc_ref[...] + r_ref[...]


def matmul_residual(x2d, w_t, res2d, *, tm_pref=256, tn_pref=256, tk_pref=512):
    """res + x @ w_t.  x2d: (M, K) fp32; w_t: (K, N) bf16; res2d: (M, N) fp32."""
    M, K = x2d.shape
    N = w_t.shape[1]
    tm = _pick_tile(M, tm_pref, 8)
    tn = _pick_tile(N, tn_pref, 128)
    tk = _pick_tile(K, tk_pref, 128)
    grid = (M // tm, N // tn, K // tk)
    return pl.pallas_call(
        _matmul_residual_kernel,
        out_shape=jax.ShapeDtypeStruct((M, N), jnp.float32),
        grid=grid,
        in_specs=[pl.BlockSpec((tm, tk), lambda i, j, k: (i, k)),
                  pl.BlockSpec((tk, tn), lambda i, j, k: (k, j)),
                  pl.BlockSpec((tm, tn), lambda i, j, k: (i, j))],
        out_specs=pl.BlockSpec((tm, tn), lambda i, j, k: (i, j)),
        scratch_shapes=[pltpu.VMEM((tm, tn), jnp.float32)],
        compiler_params=pltpu.CompilerParams(
            dimension_semantics=("parallel", "parallel", "arbitrary"),
            vmem_limit_bytes=VMEM_LIMIT),
    )(x2d, w_t, res2d)


# --------------- fused RMSNorm + SwiGLU FFN + residual (hidden-tiled) -------

def _ffn_kernel(x_ref, g_ref, w1_ref, w3_ref, w2_ref, o_ref, acc_ref, *, eps):
    l = pl.program_id(1)

    @pl.when(l == 0)
    def _():
        acc_ref[...] = jnp.zeros_like(acc_ref)

    x = x_ref[...]                                        # (tm, D) fp32
    var = jnp.mean(x * x, axis=-1, keepdims=True)
    xn = (x * lax.rsqrt(var + eps) * g_ref[...]).astype(jnp.bfloat16)
    h1 = jnp.dot(xn, w1_ref[...], preferred_element_type=jnp.float32)
    h3 = jnp.dot(xn, w3_ref[...], preferred_element_type=jnp.float32)
    gated = (jax.nn.silu(h1) * h3).astype(jnp.bfloat16)
    acc_ref[...] += jnp.dot(gated, w2_ref[...],
                            preferred_element_type=jnp.float32)

    @pl.when(l == pl.num_programs(1) - 1)
    def _():
        o_ref[...] = x + acc_ref[...]


def ffn_residual(x2d, g, w1_t, w3_t, w2_t, eps, *, tm_pref=256, th_pref=256):
    """x + w2(silu(w1 rms(x)) * w3 rms(x)), hidden dim tiled with fp32 acc."""
    M, D = x2d.shape
    Hd = w1_t.shape[1]
    tm = _pick_tile(M, tm_pref, 8)
    th = _pick_tile(Hd, th_pref, 128)
    grid = (M // tm, Hd // th)
    return pl.pallas_call(
        functools.partial(_ffn_kernel, eps=eps),
        out_shape=jax.ShapeDtypeStruct((M, D), jnp.float32),
        grid=grid,
        in_specs=[pl.BlockSpec((tm, D), lambda i, l: (i, 0)),
                  pl.BlockSpec((1, D), lambda i, l: (0, 0)),
                  pl.BlockSpec((D, th), lambda i, l: (0, l)),
                  pl.BlockSpec((D, th), lambda i, l: (0, l)),
                  pl.BlockSpec((th, D), lambda i, l: (l, 0))],
        out_specs=pl.BlockSpec((tm, D), lambda i, l: (i, 0)),
        scratch_shapes=[pltpu.VMEM((tm, D), jnp.float32)],
        compiler_params=pltpu.CompilerParams(
            dimension_semantics=("parallel", "arbitrary"),
            vmem_limit_bytes=VMEM_LIMIT),
    )(x2d, g, w1_t, w3_t, w2_t)


# -------------------- GQA attention (grouped heads, in-kernel mask) ---------

def _attention_kernel(q_ref, k_ref, v_ref, o_ref, *, scale, start_pos):
    q = q_ref[0]                                          # (n_rep, S, Dh) fp32
    k = k_ref[0]                                          # (S, Dh) fp32
    v = v_ref[0]                                          # (S, Dh) fp32
    n_rep, Sq, Dh = q.shape
    q2 = q.reshape(n_rep * Sq, Dh).astype(jnp.bfloat16)
    # scores: contract the last dims of q and k directly (no k.T materialized)
    s = lax.dot_general(q2, k.astype(jnp.bfloat16),
                        dimension_numbers=(((1,), (1,)), ((), ())),
                        preferred_element_type=jnp.float32) * scale
    # causal mask built in-kernel (no (S,S) HBM array / DMA)
    rows = lax.broadcasted_iota(jnp.int32, s.shape, 0) % Sq
    cols = lax.broadcasted_iota(jnp.int32, s.shape, 1)
    s = jnp.where(cols > rows + start_pos, NEG_INF, s)
    m = jnp.max(s, axis=-1, keepdims=True)
    e = jnp.exp(s - m)
    denom = jnp.sum(e, axis=-1, keepdims=True)
    p = e * pl.reciprocal(denom, approx=True)
    o2 = jnp.dot(p.astype(jnp.bfloat16), v.astype(jnp.bfloat16),
                 preferred_element_type=jnp.float32)
    o_ref[0] = o2.reshape(n_rep, Sq, Dh).astype(o_ref.dtype)


def attention_core(qg, kg, vg, scale, start_pos):
    """qg: (B*KVH, n_rep, S, Dh); kg/vg: (B*KVH, S, Dh) (shared per group)."""
    G, n_rep, S, Dh = qg.shape
    # TODO(synk): flash-style K/V tiling with online softmax for long S; the
    # full (n_rep*S, S) score block is fine at prefill lengths used here.
    return pl.pallas_call(
        functools.partial(_attention_kernel, scale=scale, start_pos=start_pos),
        out_shape=jax.ShapeDtypeStruct((G, n_rep, S, Dh), jnp.float32),
        grid=(G,),
        in_specs=[pl.BlockSpec((1, n_rep, S, Dh), lambda g: (g, 0, 0, 0)),
                  pl.BlockSpec((1, S, Dh), lambda g: (g, 0, 0)),
                  pl.BlockSpec((1, S, Dh), lambda g: (g, 0, 0))],
        out_specs=pl.BlockSpec((1, n_rep, S, Dh), lambda g: (g, 0, 0, 0)),
        compiler_params=pltpu.CompilerParams(
            dimension_semantics=("parallel",),
            vmem_limit_bytes=VMEM_LIMIT),
    )(qg, kg, vg)


# ------------------------------- JAX glue -----------------------------------

def precompute_freqs_cos_sin(dim, end, theta):
    freqs = 1.0 / theta ** (jnp.arange(0, dim, 2)[: dim // 2].astype(jnp.float32) / dim)
    t = jnp.arange(end, dtype=jnp.float32)
    freqs = jnp.outer(t, freqs)
    return jnp.cos(freqs), jnp.sin(freqs)


def apply_rope(xq, xk, cos, sin):
    """xq: (B,S,H,Dh); xk: (B,S,KVH,Dh); cos/sin: (S, Dh) fp32 (fp16-rounded)."""
    # TODO(synk): fuse RoPE into the attention kernel via pltpu.roll on the
    # lane axis; kept as elementwise JAX glue here (no transposes needed).
    cos = cos[None, :, None, :]
    sin = sin[None, :, None, :]

    def rot_half(x):
        d = x.shape[-1]
        return jnp.concatenate((-x[..., d // 2:], x[..., : d // 2]), axis=-1)

    return xq * cos + rot_half(xq) * sin, xk * cos + rot_half(xk) * sin


def init_params(key, cfg):
    D = cfg["dim"]
    H = cfg["n_heads"]
    KVH = cfg["n_kv_heads"]
    hd = D // H
    hidden = int(2 * (4 * D) / 3)
    hidden = cfg["multiple_of"] * ((hidden + cfg["multiple_of"] - 1) // cfg["multiple_of"])

    def dense(k, shape, scale=0.02):
        return scale * jax.random.normal(k, shape, dtype=jnp.float32)

    keys = jax.random.split(key, 2 + cfg["n_layers"])
    params = {
        "tok_embeddings": dense(keys[0], (cfg["vocab_size"], D)),
        # pre-transposed once, stored bf16 (no per-call wrapper transposes)
        "output_t": dense(keys[1], (cfg["vocab_size"], D)).T.astype(jnp.bfloat16),
        "norm": jnp.ones((1, D), jnp.float32),
        "layers": [],
    }
    for li in range(cfg["n_layers"]):
        lk = jax.random.split(keys[2 + li], 7)
        wq = dense(lk[0], (H * hd, D))
        wk = dense(lk[1], (KVH * hd, D))
        wv = dense(lk[2], (KVH * hd, D))
        wo = dense(lk[3], (D, H * hd))
        w1 = dense(lk[4], (hidden, D))
        w2 = dense(lk[5], (D, hidden))
        w3 = dense(lk[6], (hidden, D))
        params["layers"].append(dict(
            wqkv_t=jnp.concatenate([wq, wk, wv], axis=0).T.astype(jnp.bfloat16),
            wo_t=wo.T.astype(jnp.bfloat16),
            w1_t=w1.T.astype(jnp.bfloat16),
            w3_t=w3.T.astype(jnp.bfloat16),
            w2_t=w2.T.astype(jnp.bfloat16),
            attention_norm=jnp.ones((1, D), jnp.float32),
            ffn_norm=jnp.ones((1, D), jnp.float32),
        ))
    cos, sin = precompute_freqs_cos_sin(hd, cfg["max_seq_len"] // 2,
                                        cfg["rope_theta"])
    params["freqs_cos"] = cos
    params["freqs_sin"] = sin
    return params


def transformer_forward(params, tokens, start_pos, cfg):
    # TODO(synk): KV-cache decode path (start_pos > 0) not implemented; with
    # start_pos == 0 the sliced cache equals the freshly-computed k/v, which
    # is what generate() exercises.
    assert start_pos == 0
    B, S = tokens.shape
    D = cfg["dim"]
    H = cfg["n_heads"]
    KVH = cfg["n_kv_heads"]
    hd = D // H
    n_rep = H // KVH
    eps = cfg["norm_eps"]
    scale = 1.0 / math.sqrt(hd)
    M = B * S
    Nq, Nkv = H * hd, KVH * hd

    h2d = params["tok_embeddings"][tokens].reshape(M, D)   # gather (glue)

    # cos/sin: match the torch DTYPE=fp16 cast before the fp32 multiply.
    cos_s = params["freqs_cos"][start_pos:start_pos + S]
    sin_s = params["freqs_sin"][start_pos:start_pos + S]
    cos_s = cos_s.astype(jnp.float16).astype(jnp.float32)
    sin_s = sin_s.astype(jnp.float16).astype(jnp.float32)
    cos_s = jnp.concatenate((cos_s, cos_s), axis=1)         # (S, hd)
    sin_s = jnp.concatenate((sin_s, sin_s), axis=1)

    for layer in params["layers"]:
        # fused attention_norm + QKV projection (single x read, one weight DMA)
        qkv = norm_linear(h2d, layer["attention_norm"], layer["wqkv_t"], eps)
        xq = qkv[:, :Nq].reshape(B, S, H, hd)
        xk = qkv[:, Nq:Nq + Nkv].reshape(B, S, KVH, hd)
        xv = qkv[:, Nq + Nkv:].reshape(B, S, KVH, hd)
        xq, xk = apply_rope(xq, xk, cos_s, sin_s)

        # group query heads by their KV head (GQA) — no repeat_kv duplication
        qg = xq.transpose(0, 2, 1, 3).reshape(B * KVH, n_rep, S, hd)
        kg = xk.transpose(0, 2, 1, 3).reshape(B * KVH, S, hd)
        vg = xv.transpose(0, 2, 1, 3).reshape(B * KVH, S, hd)
        attn = attention_core(qg, kg, vg, scale, start_pos)
        attn2d = attn.reshape(B, H, S, hd).transpose(0, 2, 1, 3).reshape(M, Nq)

        # wo projection fused with the residual add (K-tiled, fp32 accumulator)
        h2d = matmul_residual(attn2d, layer["wo_t"], h2d)

        # fused ffn_norm + SwiGLU + residual (hidden-tiled, fp32 accumulator)
        h2d = ffn_residual(h2d, layer["ffn_norm"], layer["w1_t"],
                           layer["w3_t"], layer["w2_t"], eps)

    # fused final RMSNorm + logits projection, vocab tiled on the lane axis
    logits = norm_linear(h2d, params["norm"], params["output_t"], eps)
    return logits.reshape(B, S, cfg["vocab_size"]).astype(jnp.float32)


# --------------------------------- main --------------------------------------

if __name__ == "__main__":
    cfg = dict(dim=128, n_layers=2, n_heads=4, n_kv_heads=2, vocab_size=512,
               multiple_of=64, norm_eps=1e-5, rope_theta=1000000.0,
               max_batch_size=2, max_seq_len=32)

    root = jax.random.PRNGKey(0)
    pkey, tkey = jax.random.split(root)
    params = init_params(pkey, cfg)

    B, S = 2, 8
    tokens = jax.random.randint(tkey, (B, S), 0, cfg["vocab_size"], dtype=jnp.int32)

    fwd = jax.jit(functools.partial(transformer_forward, start_pos=0, cfg=cfg))
    logits = fwd(params, tokens)
    logits = jax.block_until_ready(logits)

    assert logits.shape == (B, S, cfg["vocab_size"]), logits.shape
    assert logits.dtype == jnp.float32
    assert bool(jnp.all(jnp.isfinite(logits)))
    print("KERNEL_OK")
</pallas_src>

<mosaic_0001>
module attributes {stable_mosaic.version = 11 : i64} {
  func.func @_ffn_kernel(%arg0: i32, %arg1: i32, %arg2: memref<16x128xf32, #tpu.memory_space<vmem>>, %arg3: memref<1x128xf32, #tpu.memory_space<vmem>>, %arg4: memref<128x128xbf16, #tpu.memory_space<vmem>>, %arg5: memref<128x128xbf16, #tpu.memory_space<vmem>>, %arg6: memref<128x128xbf16, #tpu.memory_space<vmem>>, %arg7: memref<16x128xf32, #tpu.memory_space<vmem>>, %arg8: memref<16x128xf32, #tpu.memory_space<vmem>>) attributes {dimension_semantics = [#tpu.dimension_semantics<parallel>, #tpu.dimension_semantics<arbitrary>], iteration_bounds = array<i64: 1, 3>, scalar_prefetch = 0 : i64, scratch_operands = 1 : i64, tpu.core_type = #tpu.core_type<tc>, window_params = [{transform_indices = @transform_0, window_bounds = array<i64: 16, 128>}, {pipeline_mode = #tpu.pipeline_mode<synchronous>, transform_indices = @transform_1, window_bounds = array<i64: 1, 128>}, {transform_indices = @transform_2, window_bounds = array<i64: 128, 128>}, {transform_indices = @transform_3, window_bounds = array<i64: 128, 128>}, {transform_indices = @transform_4, window_bounds = array<i64: 128, 128>}, {transform_indices = @transform_5, window_bounds = array<i64: 16, 128>}]} {
    %c0_i32 = arith.constant 0 : i32
    %0 = arith.cmpi eq, %arg1, %c0_i32 : i32
    %1 = arith.extui %0 : i1 to i32
    %c0_i32_0 = arith.constant 0 : i32
    %2 = arith.cmpi ne, %1, %c0_i32_0 : i32
    scf.if %2 {
      %cst_21 = arith.constant 0.000000e+00 : f32
      %38 = vector.broadcast %cst_21 : f32 to vector<16x128xf32>
      %c0_22 = arith.constant 0 : index
      %c0_23 = arith.constant 0 : index
      %39 = vector.load %arg8[%c0_22, %c0_23] : memref<16x128xf32, #tpu.memory_space<vmem>>, vector<16x128xf32>
      tpu.vector_store %arg8[%c0_22, %c0_23], %38 {strides = array<i32>} : memref<16x128xf32, #tpu.memory_space<vmem>>, vector<16x128xf32>,
    } else {
    }
    %c0 = arith.constant 0 : index
    %c0_1 = arith.constant 0 : index
    %3 = vector.load %arg2[%c0, %c0_1] : memref<16x128xf32, #tpu.memory_space<vmem>>, vector<16x128xf32>
    %4 = arith.mulf %3, %3 : vector<16x128xf32>
    %cst = arith.constant dense<0.000000e+00> : vector<16xf32>
    %5 = vector.multi_reduction <add>, %4, %cst [1] : vector<16x128xf32> to vector<16xf32>
    %6 = vector.shape_cast %5 : vector<16xf32> to vector<16x1xf32>
    %cst_2 = arith.constant 1.280000e+02 : f32
    %7 = vector.broadcast %cst_2 : f32 to vector<16x1xf32>
    %8 = arith.divf %6, %7 : vector<16x1xf32>
    %cst_3 = arith.constant 9.99999974E-6 : f32
    %9 = vector.broadcast %cst_3 : f32 to vector<16x1xf32>
    %10 = arith.addf %8, %9 : vector<16x1xf32>
    %11 = math.rsqrt %10 : vector<16x1xf32>
    %12 = vector.broadcast %11 : vector<16x1xf32> to vector<16x128xf32>
    %13 = arith.mulf %3, %12 : vector<16x128xf32>
    %c0_4 = arith.constant 0 : index
    %c0_5 = arith.constant 0 : index
    %14 = vector.load %arg3[%c0_4, %c0_5] : memref<1x128xf32, #tpu.memory_space<vmem>>, vector<1x128xf32>
    %15 = vector.broadcast %14 : vector<1x128xf32> to vector<16x128xf32>
    %16 = arith.mulf %13, %15 : vector<16x128xf32>
    %17 = arith.truncf %16 : vector<16x128xf32> to vector<16x128xbf16>
    %c0_6 = arith.constant 0 : index
    %c0_7 = arith.constant 0 : index
    %18 = vector.load %arg4[%c0_6, %c0_7] : memref<128x128xbf16, #tpu.memory_space<vmem>>, vector<128x128xbf16>
    %cst_8 = arith.constant dense<0.000000e+00> : vector<16x128xf32>
    %19 = tpu.matmul %17, %18, %cst_8 {dimension_numbers = #tpu.dot_dimension_numbers<[1], [0], [0], [1], [0, 0, 1, 1], [], []>} : vector<16x128xbf16>, vector<128x128xbf16>, vector<16x128xf32> -> vector<16x128xf32>
    %c0_9 = arith.constant 0 : index
    %c0_10 = arith.constant 0 : index
    %20 = vector.load %arg5[%c0_9, %c0_10] : memref<128x128xbf16, #tpu.memory_space<vmem>>, vector<128x128xbf16>
    %cst_11 = arith.constant dense<0.000000e+00> : vector<16x128xf32>
    %21 = tpu.matmul %17, %20, %cst_11 {dimension_numbers = #tpu.dot_dimension_numbers<[1], [0], [0], [1], [0, 0, 1, 1], [], []>} : vector<16x128xbf16>, vector<128x128xbf16>, vector<16x128xf32> -> vector<16x128xf32>
    %22 = arith.negf %19 : vector<16x128xf32>
    %23 = math.exp %22 : vector<16x128xf32>
    %cst_12 = arith.constant 1.000000e+00 : f32
    %24 = vector.broadcast %cst_12 : f32 to vector<16x128xf32>
    %25 = arith.addf %24, %23 : vector<16x128xf32>
    %26 = arith.divf %24, %25 : vector<16x128xf32>
    %27 = arith.mulf %19, %26 : vector<16x128xf32>
    %28 = arith.mulf %27, %21 : vector<16x128xf32>
    %29 = arith.truncf %28 : vector<16x128xf32> to vector<16x128xbf16>
    %c0_13 = arith.constant 0 : index
    %c0_14 = arith.constant 0 : index
    %30 = vector.load %arg8[%c0_13, %c0_14] : memref<16x128xf32, #tpu.memory_space<vmem>>, vector<16x128xf32>
    %c0_15 = arith.constant 0 : index
    %c0_16 = arith.constant 0 : index
    %31 = vector.load %arg6[%c0_15, %c0_16] : memref<128x128xbf16, #tpu.memory_space<vmem>>, vector<128x128xbf16>
    %cst_17 = arith.constant dense<0.000000e+00> : vector<16x128xf32>
    %32 = tpu.matmul %29, %31, %cst_17 {dimension_numbers = #tpu.dot_dimension_numbers<[1], [0], [0], [1], [0, 0, 1, 1], [], []>} : vector<16x128xbf16>, vector<128x128xbf16>, vector<16x128xf32> -> vector<16x128xf32>
    %33 = arith.addf %30, %32 : vector<16x128xf32>
    %c0_18 = arith.constant 0 : index
    %c0_19 = arith.constant 0 : index
    %34 = vector.load %arg8[%c0_18, %c0_19] : memref<16x128xf32, #tpu.memory_space<vmem>>, vector<16x128xf32>
    tpu.vector_store %arg8[%c0_18, %c0_19], %33 {strides = array<i32>} : memref<16x128xf32, #tpu.memory_space<vmem>>, vector<16x128xf32>,
    %c2_i32 = arith.constant 2 : i32
    %35 = arith.cmpi eq, %arg1, %c2_i32 : i32
    %36 = arith.extui %35 : i1 to i32
    %c0_i32_20 = arith.constant 0 : i32
    %37 = arith.cmpi ne, %36, %c0_i32_20 : i32
    scf.if %37 {
      %c0_21 = arith.constant 0 : index
      %c0_22 = arith.constant 0 : index
      %38 = vector.load %arg8[%c0_21, %c0_22] : memref<16x128xf32, #tpu.memory_space<vmem>>, vector<16x128xf32>
      %39 = arith.addf %3, %38 : vector<16x128xf32>
      %c0_23 = arith.constant 0 : index
      %c0_24 = arith.constant 0 : index
      %40 = vector.load %arg7[%c0_23, %c0_24] : memref<16x128xf32, #tpu.memory_space<vmem>>, vector<16x128xf32>
      tpu.vector_store %arg7[%c0_23, %c0_24], %39 {strides = array<i32>} : memref<16x128xf32, #tpu.memory_space<vmem>>, vector<16x128xf32>,
    } else {
    }
    return
  }
  func.func @transform_0(%arg0: i32, %arg1: i32) -> (i32, i32) {
    %c0_i32 = arith.constant 0 : i32
    %c0_i32_0 = arith.constant 0 : i32
    return %arg0, %c0_i32 : i32, i32
  }
  func.func @transform_1(%arg0: i32, %arg1: i32) -> (i32, i32) {
    %c0_i32 = arith.constant 0 : i32
    %c0_i32_0 = arith.constant 0 : i32
    %c0_i32_1 = arith.constant 0 : i32
    return %c0_i32, %c0_i32_0 : i32, i32
  }
  func.func @transform_2(%arg0: i32, %arg1: i32) -> (i32, i32) {
    %c0_i32 = arith.constant 0 : i32
    %c0_i32_0 = arith.constant 0 : i32
    return %c0_i32, %arg1 : i32, i32
  }
  func.func @transform_3(%arg0: i32, %arg1: i32) -> (i32, i32) {
    %c0_i32 = arith.constant 0 : i32
    %c0_i32_0 = arith.constant 0 : i32
    return %c0_i32, %arg1 : i32, i32
  }
  func.func @transform_4(%arg0: i32, %arg1: i32) -> (i32, i32) {
    %c0_i32 = arith.constant 0 : i32
    %c0_i32_0 = arith.constant 0 : i32
    return %arg1, %c0_i32 : i32, i32
  }
  func.func @transform_5(%arg0: i32, %arg1: i32) -> (i32, i32) {
    %c0_i32 = arith.constant 0 : i32
    %c0_i32_0 = arith.constant 0 : i32
    return %arg0, %c0_i32 : i32, i32
  }
}

module attributes {stable_mosaic.version = 11 : i64} {
  func.func @_attention_kernel(%arg0: i32, %arg1: memref<1x2x8x32xf32, #tpu.memory_space<vmem>>, %arg2: memref<1x8x32xf32, #tpu.memory_space<vmem>>, %arg3: memref<1x8x32xf32, #tpu.memory_space<vmem>>, %arg4: memref<1x2x8x32xf32, #tpu.memory_space<vmem>>) attributes {dimension_semantics = [#tpu.dimension_semantics<parallel>], iteration_bounds = array<i64: 4>, scalar_prefetch = 0 : i64, scratch_operands = 0 : i64, tpu.core_type = #tpu.core_type<tc>, window_params = [{transform_indices = @transform_0, window_bounds = array<i64: 1, 2, 8, 32>}, {transform_indices = @transform_1, window_bounds = array<i64: 1, 8, 32>}, {transform_indices = @transform_2, window_bounds = array<i64: 1, 8, 32>}, {transform_indices = @transform_3, window_bounds = array<i64: 1, 2, 8, 32>}]} {
    %c0 = arith.constant 0 : index
    %c0_0 = arith.constant 0 : index
    %c0_1 = arith.constant 0 : index
    %c0_2 = arith.constant 0 : index
    %0 = vector.load %arg1[%c0, %c0_0, %c0_1, %c0_2] : memref<1x2x8x32xf32, #tpu.memory_space<vmem>>, vector<1x2x8x32xf32>
    %1 = vector.shape_cast %0 : vector<1x2x8x32xf32> to vector<2x8x32xf32>
    %c0_3 = arith.constant 0 : index
    %c0_4 = arith.constant 0 : index
    %c0_5 = arith.constant 0 : index
    %2 = vector.load %arg2[%c0_3, %c0_4, %c0_5] : memref<1x8x32xf32, #tpu.memory_space<vmem>>, vector<1x8x32xf32>
    %3 = vector.shape_cast %2 : vector<1x8x32xf32> to vector<8x32xf32>
    %c0_6 = arith.constant 0 : index
    %c0_7 = arith.constant 0 : index
    %c0_8 = arith.constant 0 : index
    %4 = vector.load %arg3[%c0_6, %c0_7, %c0_8] : memref<1x8x32xf32, #tpu.memory_space<vmem>>, vector<1x8x32xf32>
    %5 = vector.shape_cast %4 : vector<1x8x32xf32> to vector<8x32xf32>
    %6 = vector.shape_cast %1 : vector<2x8x32xf32> to vector<16x32xf32>
    %7 = arith.truncf %6 : vector<16x32xf32> to vector<16x32xbf16>
    %8 = arith.truncf %3 : vector<8x32xf32> to vector<8x32xbf16>
    %cst = arith.constant dense<0.000000e+00> : vector<16x8xf32>
    %9 = tpu.matmul %7, %8, %cst {dimension_numbers = #tpu.dot_dimension_numbers<[1], [1], [0], [0], [0, 0, 1, 0], [], []>} : vector<16x32xbf16>, vector<8x32xbf16>, vector<16x8xf32> -> vector<16x8xf32>
    %cst_9 = arith.constant 0.176776692 : f32
    %10 = vector.broadcast %cst_9 : f32 to vector<16x8xf32>
    %11 = arith.mulf %9, %10 : vector<16x8xf32>
    %12 = tpu.iota {dimensions = array<i32: 0>} : vector<16x8xi32>
    %c8_i32 = arith.constant 8 : i32
    %c0_i32 = arith.constant 0 : i32
    %13 = arith.cmpi eq, %c8_i32, %c0_i32 : i32
    %c1_i32 = arith.constant 1 : i32
    %14 = arith.select %13, %c1_i32, %c8_i32 : i32
    %15 = vector.broadcast %14 : i32 to vector<16x8xi32>
    %16 = arith.remsi %12, %15 : vector<16x8xi32>
    %c0_i32_10 = arith.constant 0 : i32
    %17 = vector.broadcast %c0_i32_10 : i32 to vector<16x8xi32>
    %18 = arith.cmpi ne, %16, %17 : vector<16x8xi32>
    %c0_i32_11 = arith.constant 0 : i32
    %19 = vector.broadcast %c0_i32_11 : i32 to vector<16x8xi32>
    %20 = arith.cmpi slt, %16, %19 : vector<16x8xi32>
    %c0_i32_12 = arith.constant 0 : i32
    %21 = arith.cmpi slt, %14, %c0_i32_12 : i32
    %22 = vector.broadcast %21 : i1 to vector<16x8xi1>
    %23 = vector.broadcast %22 : vector<16x8xi1> to vector<16x8xi1>
    %24 = arith.xori %20, %23 : vector<16x8xi1>
    %25 = arith.andi %24, %18 : vector<16x8xi1>
    %26 = vector.broadcast %14 : i32 to vector<16x8xi32>
    %27 = arith.addi %16, %26 : vector<16x8xi32>
    %28 = arith.select %25, %27, %16 : vector<16x8xi1>, vector<16x8xi32>
    %29 = tpu.iota {dimensions = array<i32: 1>} : vector<16x8xi32>
    %c0_i32_13 = arith.constant 0 : i32
    %30 = vector.broadcast %c0_i32_13 : i32 to vector<16x8xi32>
    %31 = arith.addi %28, %30 : vector<16x8xi32>
    %32 = arith.cmpi sgt, %29, %31 : vector<16x8xi32>
    %cst_14 = arith.constant -1.000000e+30 : f32
    %33 = vector.broadcast %cst_14 : f32 to vector<16x8xf32>
    %34 = arith.select %32, %33, %11 : vector<16x8xi1>, vector<16x8xf32>
    %cst_15 = arith.constant dense<0xFF800000> : vector<16xf32>
    %35 = vector.multi_reduction <maximumf>, %34, %cst_15 [1] : vector<16x8xf32> to vector<16xf32>
    %36 = vector.shape_cast %35 : vector<16xf32> to vector<16x1xf32>
    %37 = vector.broadcast %36 : vector<16x1xf32> to vector<16x8xf32>
    %38 = arith.subf %34, %37 : vector<16x8xf32>
    %39 = math.exp %38 : vector<16x8xf32>
    %cst_16 = arith.constant dense<0.000000e+00> : vector<16xf32>
    %40 = vector.multi_reduction <add>, %39, %cst_16 [1] : vector<16x8xf32> to vector<16xf32>
    %41 = vector.shape_cast %40 : vector<16xf32> to vector<16x1xf32>
    %42 = tpu.reciprocal %41 {approx = true} : vector<16x1xf32> -> vector<16x1xf32>
    %43 = vector.broadcast %42 : vector<16x1xf32> to vector<16x8xf32>
    %44 = arith.mulf %39, %43 : vector<16x8xf32>
    %45 = arith.truncf %44 : vector<16x8xf32> to vector<16x8xbf16>
    %46 = arith.truncf %5 : vector<8x32xf32> to vector<8x32xbf16>
    %cst_17 = arith.constant dense<0.000000e+00> : vector<16x32xf32>
    %47 = tpu.matmul %45, %46, %cst_17 {dimension_numbers = #tpu.dot_dimension_numbers<[1], [0], [0], [1], [0, 0, 1, 1], [], []>} : vector<16x8xbf16>, vector<8x32xbf16>, vector<16x32xf32> -> vector<16x32xf32>
    %48 = vector.shape_cast %47 : vector<16x32xf32> to vector<2x8x32xf32>
    %c0_18 = arith.constant 0 : index
    %c0_19 = arith.constant 0 : index
    %c0_20 = arith.constant 0 : index
    %c0_21 = arith.constant 0 : index
    %49 = vector.load %arg4[%c0_18, %c0_19, %c0_20, %c0_21] : memref<1x2x8x32xf32, #tpu.memory_space<vmem>>, vector<1x2x8x32xf32>
    %50 = vector.shape_cast %49 : vector<1x2x8x32xf32> to vector<2x8x32xf32>
    %51 = vector.shape_cast %48 : vector<2x8x32xf32> to vector<1x2x8x32xf32>
    tpu.vector_store %arg4[%c0_18, %c0_19, %c0_20, %c0_21], %51 {strides = array<i32>} : memref<1x2x8x32xf32, #tpu.memory_space<vmem>>, vector<1x2x8x32xf32>,
    return
  }
  func.func @transform_0(%arg0: i32) -> (i32, i32, i32, i32) {
    %c0_i32 = arith.constant 0 : i32
    %c0_i32_0 = arith.constant 0 : i32
    %c0_i32_1 = arith.constant 0 : i32
    %c0_i32_2 = arith.constant 0 : i32
    return %arg0, %c0_i32, %c0_i32_0, %c0_i32_1 : i32, i32, i32, i32
  }
  func.func @transform_1(%arg0: i32) -> (i32, i32, i32) {
    %c0_i32 = arith.constant 0 : i32
    %c0_i32_0 = arith.constant 0 : i32
    %c0_i32_1 = arith.constant 0 : i32
    return %arg0, %c0_i32, %c0_i32_0 : i32, i32, i32
  }
  func.func @transform_2(%arg0: i32) -> (i32, i32, i32) {
    %c0_i32 = arith.constant 0 : i32
    %c0_i32_0 = arith.constant 0 : i32
    %c0_i32_1 = arith.constant 0 : i32
    return %arg0, %c0_i32, %c0_i32_0 : i32, i32, i32
  }
  func.func @transform_3(%arg0: i32) -> (i32, i32, i32, i32) {
    %c0_i32 = arith.constant 0 : i32
    %c0_i32_0 = arith.constant 0 : i32
    %c0_i32_1 = arith.constant 0 : i32
    %c0_i32_2 = arith.constant 0 : i32
    return %arg0, %c0_i32, %c0_i32_0, %c0_i32_1 : i32, i32, i32, i32
  }
}

module attributes {stable_mosaic.version = 11 : i64} {
  func.func @_norm_matmul_kernel(%arg0: i32, %arg1: i32, %arg2: memref<16x128xf32, #tpu.memory_space<vmem>>, %arg3: memref<1x128xf32, #tpu.memory_space<vmem>>, %arg4: memref<128x256xbf16, #tpu.memory_space<vmem>>, %arg5: memref<16x256xf32, #tpu.memory_space<vmem>>) attributes {dimension_semantics = [#tpu.dimension_semantics<parallel>, #tpu.dimension_semantics<parallel>], iteration_bounds = array<i64: 1, 1>, scalar_prefetch = 0 : i64, scratch_operands = 0 : i64, tpu.core_type = #tpu.core_type<tc>, window_params = [{transform_indices = @transform_0, window_bounds = array<i64: 16, 128>}, {pipeline_mode = #tpu.pipeline_mode<synchronous>, transform_indices = @transform_1, window_bounds = array<i64: 1, 128>}, {transform_indices = @transform_2, window_bounds = array<i64: 128, 256>}, {transform_indices = @transform_3, window_bounds = array<i64: 16, 256>}]} {
    %c0 = arith.constant 0 : index
    %c0_0 = arith.constant 0 : index
    %0 = vector.load %arg2[%c0, %c0_0] : memref<16x128xf32, #tpu.memory_space<vmem>>, vector<16x128xf32>
    %1 = arith.mulf %0, %0 : vector<16x128xf32>
    %cst = arith.constant dense<0.000000e+00> : vector<16xf32>
    %2 = vector.multi_reduction <add>, %1, %cst [1] : vector<16x128xf32> to vector<16xf32>
    %3 = vector.shape_cast %2 : vector<16xf32> to vector<16x1xf32>
    %cst_1 = arith.constant 1.280000e+02 : f32
    %4 = vector.broadcast %cst_1 : f32 to vector<16x1xf32>
    %5 = arith.divf %3, %4 : vector<16x1xf32>
    %cst_2 = arith.constant 9.99999974E-6 : f32
    %6 = vector.broadcast %cst_2 : f32 to vector<16x1xf32>
    %7 = arith.addf %5, %6 : vector<16x1xf32>
    %8 = math.rsqrt %7 : vector<16x1xf32>
    %9 = vector.broadcast %8 : vector<16x1xf32> to vector<16x128xf32>
    %10 = arith.mulf %0, %9 : vector<16x128xf32>
    %c0_3 = arith.constant 0 : index
    %c0_4 = arith.constant 0 : index
    %11 = vector.load %arg3[%c0_3, %c0_4] : memref<1x128xf32, #tpu.memory_space<vmem>>, vector<1x128xf32>
    %12 = vector.broadcast %11 : vector<1x128xf32> to vector<16x128xf32>
    %13 = arith.mulf %10, %12 : vector<16x128xf32>
    %14 = arith.truncf %13 : vector<16x128xf32> to vector<16x128xbf16>
    %c0_5 = arith.constant 0 : index
    %c0_6 = arith.constant 0 : index
    %15 = vector.load %arg4[%c0_5, %c0_6] : memref<128x256xbf16, #tpu.memory_space<vmem>>, vector<128x256xbf16>
    %cst_7 = arith.constant dense<0.000000e+00> : vector<16x256xf32>
    %16 = tpu.matmul %14, %15, %cst_7 {dimension_numbers = #tpu.dot_dimension_numbers<[1], [0], [0], [1], [0, 0, 1, 1], [], []>} : vector<16x128xbf16>, vector<128x256xbf16>, vector<16x256xf32> -> vector<16x256xf32>
    %c0_8 = arith.constant 0 : index
    %c0_9 = arith.constant 0 : index
    %17 = vector.load %arg5[%c0_8, %c0_9] : memref<16x256xf32, #tpu.memory_space<vmem>>, vector<16x256xf32>
    tpu.vector_store %arg5[%c0_8, %c0_9], %16 {strides = array<i32>} : memref<16x256xf32, #tpu.memory_space<vmem>>, vector<16x256xf32>,
    return
  }
  func.func @transform_0(%arg0: i32, %arg1: i32) -> (i32, i32) {
    %c0_i32 = arith.constant 0 : i32
    %c0_i32_0 = arith.constant 0 : i32
    return %arg0, %c0_i32 : i32, i32
  }
  func.func @transform_1(%arg0: i32, %arg1: i32) -> (i32, i32) {
    %c0_i32 = arith.constant 0 : i32
    %c0_i32_0 = arith.constant 0 : i32
    %c0_i32_1 = arith.constant 0 : i32
    return %c0_i32, %c0_i32_0 : i32, i32
  }
  func.func @transform_2(%arg0: i32, %arg1: i32) -> (i32, i32) {
    %c0_i32 = arith.constant 0 : i32
    %c0_i32_0 = arith.constant 0 : i32
    return %c0_i32, %arg1 : i32, i32
  }
  func.func @transform_3(%arg0: i32, %arg1: i32) -> (i32, i32) {
    %c0_i32 = arith.constant 0 : i32
    return %arg0, %arg1 : i32, i32
  }
}

module attributes {stable_mosaic.version = 11 : i64} {
  func.func @_matmul_residual_kernel(%arg0: i32, %arg1: i32, %arg2: i32, %arg3: memref<16x128xf32, #tpu.memory_space<vmem>>, %arg4: memref<128x128xbf16, #tpu.memory_space<vmem>>, %arg5: memref<16x128xf32, #tpu.memory_space<vmem>>, %arg6: memref<16x128xf32, #tpu.memory_space<vmem>>, %arg7: memref<16x128xf32, #tpu.memory_space<vmem>>) attributes {dimension_semantics = [#tpu.dimension_semantics<parallel>, #tpu.dimension_semantics<parallel>, #tpu.dimension_semantics<arbitrary>], iteration_bounds = array<i64: 1, 1, 1>, scalar_prefetch = 0 : i64, scratch_operands = 1 : i64, tpu.core_type = #tpu.core_type<tc>, window_params = [{transform_indices = @transform_0, window_bounds = array<i64: 16, 128>}, {transform_indices = @transform_1, window_bounds = array<i64: 128, 128>}, {transform_indices = @transform_2, window_bounds = array<i64: 16, 128>}, {transform_indices = @transform_3, window_bounds = array<i64: 16, 128>}]} {
    %c0_i32 = arith.constant 0 : i32
    %0 = arith.cmpi eq, %arg2, %c0_i32 : i32
    %1 = arith.extui %0 : i1 to i32
    %c0_i32_0 = arith.constant 0 : i32
    %2 = arith.cmpi ne, %1, %c0_i32_0 : i32
    scf.if %2 {
      %cst_10 = arith.constant 0.000000e+00 : f32
      %13 = vector.broadcast %cst_10 : f32 to vector<16x128xf32>
      %c0_11 = arith.constant 0 : index
      %c0_12 = arith.constant 0 : index
      %14 = vector.load %arg7[%c0_11, %c0_12] : memref<16x128xf32, #tpu.memory_space<vmem>>, vector<16x128xf32>
      tpu.vector_store %arg7[%c0_11, %c0_12], %13 {strides = array<i32>} : memref<16x128xf32, #tpu.memory_space<vmem>>, vector<16x128xf32>,
    } else {
    }
    %c0 = arith.constant 0 : index
    %c0_1 = arith.constant 0 : index
    %3 = vector.load %arg7[%c0, %c0_1] : memref<16x128xf32, #tpu.memory_space<vmem>>, vector<16x128xf32>
    %c0_2 = arith.constant 0 : index
    %c0_3 = arith.constant 0 : index
    %4 = vector.load %arg3[%c0_2, %c0_3] : memref<16x128xf32, #tpu.memory_space<vmem>>, vector<16x128xf32>
    %5 = arith.truncf %4 : vector<16x128xf32> to vector<16x128xbf16>
    %c0_4 = arith.constant 0 : index
    %c0_5 = arith.constant 0 : index
    %6 = vector.load %arg4[%c0_4, %c0_5] : memref<128x128xbf16, #tpu.memory_space<vmem>>, vector<128x128xbf16>
    %cst = arith.constant dense<0.000000e+00> : vector<16x128xf32>
    %7 = tpu.matmul %5, %6, %cst {dimension_numbers = #tpu.dot_dimension_numbers<[1], [0], [0], [1], [0, 0, 1, 1], [], []>} : vector<16x128xbf16>, vector<128x128xbf16>, vector<16x128xf32> -> vector<16x128xf32>
    %8 = arith.addf %3, %7 : vector<16x128xf32>
    %c0_6 = arith.constant 0 : index
    %c0_7 = arith.constant 0 : index
    %9 = vector.load %arg7[%c0_6, %c0_7] : memref<16x128xf32, #tpu.memory_space<vmem>>, vector<16x128xf32>
    tpu.vector_store %arg7[%c0_6, %c0_7], %8 {strides = array<i32>} : memref<16x128xf32, #tpu.memory_space<vmem>>, vector<16x128xf32>,
    %c0_i32_8 = arith.constant 0 : i32
    %10 = arith.cmpi eq, %arg2, %c0_i32_8 : i32
    %11 = arith.extui %10 : i1 to i32
    %c0_i32_9 = arith.constant 0 : i32
    %12 = arith.cmpi ne, %11, %c0_i32_9 : i32
    scf.if %12 {
      %c0_10 = arith.constant 0 : index
      %c0_11 = arith.constant 0 : index
      %13 = vector.load %arg7[%c0_10, %c0_11] : memref<16x128xf32, #tpu.memory_space<vmem>>, vector<16x128xf32>
      %c0_12 = arith.constant 0 : index
      %c0_13 = arith.constant 0 : index
      %14 = vector.load %arg5[%c0_12, %c0_13] : memref<16x128xf32, #tpu.memory_space<vmem>>, vector<16x128xf32>
      %15 = arith.addf %13, %14 : vector<16x128xf32>
      %c0_14 = arith.constant 0 : index
      %c0_15 = arith.constant 0 : index
      %16 = vector.load %arg6[%c0_14, %c0_15] : memref<16x128xf32, #tpu.memory_space<vmem>>, vector<16x128xf32>
      tpu.vector_store %arg6[%c0_14, %c0_15], %15 {strides = array<i32>} : memref<16x128xf32, #tpu.memory_space<vmem>>, vector<16x128xf32>,
    } else {
    }
    return
  }
  func.func @transform_0(%arg0: i32, %arg1: i32, %arg2: i32) -> (i32, i32) {
    %c0_i32 = arith.constant 0 : i32
    return %arg0, %arg2 : i32, i32
  }
  func.func @transform_1(%arg0: i32, %arg1: i32, %arg2: i32) -> (i32, i32) {
    %c0_i32 = arith.constant 0 : i32
    return %arg2, %arg1 : i32, i32
  }
  func.func @transform_2(%arg0: i32, %arg1: i32, %arg2: i32) -> (i32, i32) {
    %c0_i32 = arith.constant 0 : i32
    return %arg0, %arg1 : i32, i32
  }
  func.func @transform_3(%arg0: i32, %arg1: i32, %arg2: i32) -> (i32, i32) {
    %c0_i32 = arith.constant 0 : i32
    return %arg0, %arg1 : i32, i32
  }
}

module attributes {stable_mosaic.version = 11 : i64} {
  func.func @_norm_matmul_kernel(%arg0: i32, %arg1: i32, %arg2: memref<16x128xf32, #tpu.memory_space<vmem>>, %arg3: memref<1x128xf32, #tpu.memory_space<vmem>>, %arg4: memref<128x256xbf16, #tpu.memory_space<vmem>>, %arg5: memref<16x256xf32, #tpu.memory_space<vmem>>) attributes {dimension_semantics = [#tpu.dimension_semantics<parallel>, #tpu.dimension_semantics<parallel>], iteration_bounds = array<i64: 1, 2>, scalar_prefetch = 0 : i64, scratch_operands = 0 : i64, tpu.core_type = #tpu.core_type<tc>, window_params = [{transform_indices = @transform_0, window_bounds = array<i64: 16, 128>}, {pipeline_mode = #tpu.pipeline_mode<synchronous>, transform_indices = @transform_1, window_bounds = array<i64: 1, 128>}, {transform_indices = @transform_2, window_bounds = array<i64: 128, 256>}, {transform_indices = @transform_3, window_bounds = array<i64: 16, 256>}]} {
    %c0 = arith.constant 0 : index
    %c0_0 = arith.constant 0 : index
    %0 = vector.load %arg2[%c0, %c0_0] : memref<16x128xf32, #tpu.memory_space<vmem>>, vector<16x128xf32>
    %1 = arith.mulf %0, %0 : vector<16x128xf32>
    %cst = arith.constant dense<0.000000e+00> : vector<16xf32>
    %2 = vector.multi_reduction <add>, %1, %cst [1] : vector<16x128xf32> to vector<16xf32>
    %3 = vector.shape_cast %2 : vector<16xf32> to vector<16x1xf32>
    %cst_1 = arith.constant 1.280000e+02 : f32
    %4 = vector.broadcast %cst_1 : f32 to vector<16x1xf32>
    %5 = arith.divf %3, %4 : vector<16x1xf32>
    %cst_2 = arith.constant 9.99999974E-6 : f32
    %6 = vector.broadcast %cst_2 : f32 to vector<16x1xf32>
    %7 = arith.addf %5, %6 : vector<16x1xf32>
    %8 = math.rsqrt %7 : vector<16x1xf32>
    %9 = vector.broadcast %8 : vector<16x1xf32> to vector<16x128xf32>
    %10 = arith.mulf %0, %9 : vector<16x128xf32>
    %c0_3 = arith.constant 0 : index
    %c0_4 = arith.constant 0 : index
    %11 = vector.load %arg3[%c0_3, %c0_4] : memref<1x128xf32, #tpu.memory_space<vmem>>, vector<1x128xf32>
    %12 = vector.broadcast %11 : vector<1x128xf32> to vector<16x128xf32>
    %13 = arith.mulf %10, %12 : vector<16x128xf32>
    %14 = arith.truncf %13 : vector<16x128xf32> to vector<16x128xbf16>
    %c0_5 = arith.constant 0 : index
    %c0_6 = arith.constant 0 : index
    %15 = vector.load %arg4[%c0_5, %c0_6] : memref<128x256xbf16, #tpu.memory_space<vmem>>, vector<128x256xbf16>
    %cst_7 = arith.constant dense<0.000000e+00> : vector<16x256xf32>
    %16 = tpu.matmul %14, %15, %cst_7 {dimension_numbers = #tpu.dot_dimension_numbers<[1], [0], [0], [1], [0, 0, 1, 1], [], []>} : vector<16x128xbf16>, vector<128x256xbf16>, vector<16x256xf32> -> vector<16x256xf32>
    %c0_8 = arith.constant 0 : index
    %c0_9 = arith.constant 0 : index
    %17 = vector.load %arg5[%c0_8, %c0_9] : memref<16x256xf32, #tpu.memory_space<vmem>>, vector<16x256xf32>
    tpu.vector_store %arg5[%c0_8, %c0_9], %16 {strides = array<i32>} : memref<16x256xf32, #tpu.memory_space<vmem>>, vector<16x256xf32>,
    return
  }
  func.func @transform_0(%arg0: i32, %arg1: i32) -> (i32, i32) {
    %c0_i32 = arith.constant 0 : i32
    %c0_i32_0 = arith.constant 0 : i32
    return %arg0, %c0_i32 : i32, i32
  }
  func.func @transform_1(%arg0: i32, %arg1: i32) -> (i32, i32) {
    %c0_i32 = arith.constant 0 : i32
    %c0_i32_0 = arith.constant 0 : i32
    %c0_i32_1 = arith.constant 0 : i32
    return %c0_i32, %c0_i32_0 : i32, i32
  }
  func.func @transform_2(%arg0: i32, %arg1: i32) -> (i32, i32) {
    %c0_i32 = arith.constant 0 : i32
    %c0_i32_0 = arith.constant 0 : i32
    return %c0_i32, %arg1 : i32, i32
  }
  func.func @transform_3(%arg0: i32, %arg1: i32) -> (i32, i32) {
    %c0_i32 = arith.constant 0 : i32
    return %arg0, %arg1 : i32, i32
  }
}

</mosaic_0001>

<llo_original>
// kernel: transformer_forward.12
$region0: #{transformer_forward.12}
  #allocation0 [shape = 'u32[]', space=smem, size = 0x4, offset = 0x4, fixed_abs, tag = 'smem constant byte address 0x4 - core index']
  #allocation1 [shape = 'u32[72,128]{1,0:T(1,128)}', space=vmem, size = 0x9000, scoped, tag = 'internal scratch']
  #allocation2 [shape = 'f32[16,128]{1,0:T(8,128)}', space=vmem, size = 0x2000, scoped, tag = 'scratch operand']
  %s0 = inlined_call_operand.vmem [shape: f32[16,128], index: 0, kind: input, shape index: {}]
  %s1 = inlined_call_operand.vmem [shape: f32[1,128], index: 1, kind: input, shape index: {}]
  %s2 = inlined_call_operand.vmem [shape: bf16[128,384], index: 2, kind: input, shape index: {}]
  %s3 = inlined_call_operand.vmem [shape: bf16[128,384], index: 3, kind: input, shape index: {}]
  %s4 = inlined_call_operand.vmem [shape: bf16[384,128], index: 4, kind: input, shape index: {}]
  %s5 = inlined_call_operand.vmem [shape: f32[16,128], index: 5, kind: output, shape index: {}]
  %s6 = sld [smem:[#allocation0]]
  $region143: #{transformer_forward.12} parent=0
    _
  %s8 = ssub.s32 1, %s6
  %s9 = scalar_select 0, %s8, %s6
  $region1: #{transformer_forward.12} parent=0
    #allocation3 [shape = 'u8[65536]{0}', space=vmem, size = 0x10000, scoped, tag = 'input window, operand 2']
    #allocation4 [shape = 'u8[65536]{0}', space=vmem, size = 0x10000, scoped, tag = 'input window, operand 3']
    loop: start=0, step=1, limit=5
    $region2: #{transformer_forward.12} parent=1 // loop_pre_header
      _
    $region3: #{transformer_forward.12} parent=1 // loop_header
      %s11 = sphi 0, %s15
      %p12 = scmp.ge.s32.totalorder %s11, 5
      %s18 = sphi 0, %s30
      %s19 = sphi 0, %s26
      %s20 = sphi 0, %s18
      %s21 = sphi 0, %s19
      %s22 = sphi 0, %s20
      %s23 = sphi 0, %s21
      %s33 = sphi 0, %s35
      %s36 = sphi 0, %s33
      %s37 = sphi 0, %s36
      %s53 = sphi 0, %s37
      %s57 = sphi 0, %s57
      %s59 = sphi 0, %s57
      %s60 = sphi 0, %s59
      %s74 = sphi 0, %s60
      %s80 = sphi 0, %s82
      %s83 = sphi 0, %s80
      %s84 = sphi 0, %s83
      %s100 = sphi 0, %s84
      %s106 = sphi 0, %s108
      %s109 = sphi 0, %s106
      %s110 = sphi 0, %s109
      %s126 = sphi 0, %s110
      %s132 = sphi 0, %s134
      %s135 = sphi 0, %s132
      %s136 = sphi 0, %s135
      %s152 = sphi 0, %s136
      %s158 = sphi 0, %s160
      %s161 = sphi 0, %s158
      %s162 = sphi 0, %s161
      %s178 = sphi 0, %s162
    $region4: #{transformer_forward.12} parent=1 // loop_header_branch
      %14 = sbr.rel (%p12) target = $region8
    $region5: #{transformer_forward.12} parent=1 // loop_body
      %s16 = ssub.s32 %s11, 1
      %s17 = ssub.s32 %s11, 2
      %s24 = sadd.s32 1, %s19
      %p25 = scmp.ge.s32.totalorder %s24, 3
      %s26 = scalar_select %p25, 0, %s24
      %s27 = sadd.s32 1, %s18
      %s28 = scalar_select %p25, %s27, %s18
      %p29 = scmp.ge.s32.totalorder %s28, 1
      %s30 = scalar_select %p29, 0, %s28
      %s31 = ssub.s32 %s18, %s30
      %p32 = scmp.eq.s32.totalorder %s31, 0
      %s34 = sadd.s32 %s33, 1
      %s35 = scalar_select %p32, %s33, %s34
      %p38 = pneg %p32
      %p39 = scmp.eq.s32.totalorder %s11, 2
      %p40 = por %p38, %p39
      %p41 = scmp.ne.s32.totalorder %s33, %s36
      %p42 = scmp.eq.s32.totalorder %s11, 0
      %p43 = por %p41, %p42
      %p44 = scmp.ne.s32.totalorder %s33, %s36
      %p45 = scmp.eq.s32.totalorder %s16, 2
      %p46 = por %p44, %p45
      %p47 = scmp.ne.s32.totalorder %s36, %s37
      %p48 = scmp.eq.s32.totalorder %s16, 0
      %p49 = por %p47, %p48
      %p50 = scmp.ne.s32.totalorder %s36, %s37
      %p51 = scmp.eq.s32.totalorder %s17, 2
      %p52 = por %p50, %p51
      %p54 = scmp.ne.s32.totalorder %s37, %s53
      %p55 = scmp.eq.s32.totalorder %s17, 0
      %p56 = por %p54, %p55
      %s58 = sadd.s32 %s57, 1
      %p61 = scmp.eq.s32.totalorder %s11, 2
      %p62 = scmp.ne.s32.totalorder %s57, %s59
      %p63 = scmp.eq.s32.totalorder %s11, 0
      %p64 = por %p62, %p63
      %p65 = scmp.ne.s32.totalorder %s57, %s59
      %p66 = scmp.eq.s32.totalorder %s16, 2
      %p67 = por %p65, %p66
      %p68 = scmp.ne.s32.totalorder %s59, %s60
      %p69 = scmp.eq.s32.totalorder %s16, 0
      %p70 = por %p68, %p69
      %p71 = scmp.ne.s32.totalorder %s59, %s60
      %p72 = scmp.eq.s32.totalorder %s17, 2
      %p73 = por %p71, %p72
      %p75 = scmp.ne.s32.totalorder %s60, %s74
      %p76 = scmp.eq.s32.totalorder %s17, 0
      %p77 = por %p75, %p76
      %s78 = ssub.s32 %s19, %s26
      %p79 = scmp.eq.s32.totalorder %s78, 0
      %s81 = sadd.s32 %s80, 1
      %s82 = scalar_select %p79, %s80, %s81
      %p85 = pneg %p79
      %p86 = scmp.eq.s32.totalorder %s11, 2
      %p87 = por %p85, %p86
      %p88 = scmp.ne.s32.totalorder %s80, %s83
      %p89 = scmp.eq.s32.totalorder %s11, 0
      %p90 = por %p88, %p89
      %p91 = scmp.ne.s32.totalorder %s80, %s83
      %p92 = scmp.eq.s32.totalorder %s16, 2
      %p93 = por %p91, %p92
      %p94 = scmp.ne.s32.totalorder %s83, %s84
      %p95 = scmp.eq.s32.totalorder %s16, 0
      %p96 = por %p94, %p95
      %p97 = scmp.ne.s32.totalorder %s83, %s84
      %p98 = scmp.eq.s32.totalorder %s17, 2
      %p99 = por %p97, %p98
      %p101 = scmp.ne.s32.totalorder %s84, %s100
      %p102 = scmp.eq.s32.totalorder %s17, 0
      %p103 = por %p101, %p102
      %s104 = ssub.s32 %s19, %s26
      %p105 = scmp.eq.s32.totalorder %s104, 0
      %s107 = sadd.s32 %s106, 1
      %s108 = scalar_select %p105, %s106, %s107
      %p111 = pneg %p105
      %p112 = scmp.eq.s32.totalorder %s11, 2
      %p113 = por %p111, %p112
      %p114 = scmp.ne.s32.totalorder %s106, %s109
      %p115 = scmp.eq.s32.totalorder %s11, 0
      %p116 = por %p114, %p115
      %p117 = scmp.ne.s32.totalorder %s106, %s109
      %p118 = scmp.eq.s32.totalorder %s16, 2
      %p119 = por %p117, %p118
      %p120 = scmp.ne.s32.totalorder %s109, %s110
      %p121 = scmp.eq.s32.totalorder %s16, 0
      %p122 = por %p120, %p121
      %p123 = scmp.ne.s32.totalorder %s109, %s110
      %p124 = scmp.eq.s32.totalorder %s17, 2
      %p125 = por %p123, %p124
      %p127 = scmp.ne.s32.totalorder %s110, %s126
      %p128 = scmp.eq.s32.totalorder %s17, 0
      %p129 = por %p127, %p128
      %s130 = ssub.s32 %s19, %s26
      %p131 = scmp.eq.s32.totalorder %s130, 0
      %s133 = sadd.s32 %s132, 1
      %s134 = scalar_select %p131, %s132, %s133
      %p137 = pneg %p131
      %p138 = scmp.eq.s32.totalorder %s11, 2
      %p139 = por %p137, %p138
      %p140 = scmp.ne.s32.totalorder %s132, %s135
      %p141 = scmp.eq.s32.totalorder %s11, 0
      %p142 = por %p140, %p141
      %p143 = scmp.ne.s32.totalorder %s132, %s135
      %p144 = scmp.eq.s32.totalorder %s16, 2
      %p145 = por %p143, %p144
      %p146 = scmp.ne.s32.totalorder %s135, %s136
      %p147 = scmp.eq.s32.totalorder %s16, 0
      %p148 = por %p146, %p147
      %p149 = scmp.ne.s32.totalorder %s135, %s136
      %p150 = scmp.eq.s32.totalorder %s17, 2
      %p151 = por %p149, %p150
      %p153 = scmp.ne.s32.totalorder %s136, %s152
      %p154 = scmp.eq.s32.totalorder %s17, 0
      %p155 = por %p153, %p154
      %s156 = ssub.s32 %s18, %s30
      %p157 = scmp.eq.s32.totalorder %s156, 0
      %s159 = sadd.s32 %s158, 1
      %s160 = scalar_select %p157, %s158, %s159
      %p163 = pneg %p157
      %p164 = scmp.eq.s32.totalorder %s11, 2
      %p165 = por %p163, %p164
      %p166 = scmp.ne.s32.totalorder %s158, %s161
      %p167 = scmp.eq.s32.totalorder %s11, 0
      %p168 = por %p166, %p167
      %p169 = scmp.ne.s32.totalorder %s158, %s161
      %p170 = scmp.eq.s32.totalorder %s16, 2
      %p171 = por %p169, %p170
      %p172 = scmp.ne.s32.totalorder %s161, %s162
      %p173 = scmp.eq.s32.totalorder %s16, 0
      %p174 = por %p172, %p173
      %p175 = scmp.ne.s32.totalorder %s161, %s162
      %p176 = scmp.eq.s32.totalorder %s17, 2
      %p177 = por %p175, %p176
      %p179 = scmp.ne.s32.totalorder %s162, %s178
      %p180 = scmp.eq.s32.totalorder %s17, 0
      %p181 = por %p179, %p180
      %p182 = scmp.le.s32.totalorder 1, %s11
      %p183 = scmp.lt.s32.totalorder %s11, 4
      %p184 = pnand %p182, %p183
      %p185 = pneg %p184
      // Predicated region
      $region9: #{transformer_forward.12} parent=5 // pred_check
        _
      $region10: #{transformer_forward.12} parent=5 // pred_check_branch
        %187 = sbr.rel (%p184) target = $region12
      $region11: #{transformer_forward.12} parent=5 // pred_region
        %s188 = ssub.s32 %s11, 1
        // Predicated region
        $region13: #{transformer_forward.12} parent=11 // pred_check
          %p189 = pneg %p49
        $region14: #{transformer_forward.12} parent=11 // pred_check_branch
          %191 = sbr.rel (%p189) target = $region16
        $region15: #{transformer_forward.12} parent=11 // pred_region
          %s192 = smul.u32 2, %s20
          %p193 = scmp.lt.s32.totalorder %s192, 1
          %s194 = scalar_select %p193, %s192, 1
          %s195 = smul.addr %s194, 8
          %s196 = scalar_lea.vmem %s0, %s195
          %s197 = smul.u32 2, %s20
        $region16: #{transformer_forward.12} parent=11 // pred_fallthru
          _
        // Predicated region
        $region17: #{transformer_forward.12} parent=11 // pred_check
          %p198 = pneg %p70
        $region18: #{transformer_forward.12} parent=11 // pred_check_branch
          %200 = sbr.rel (%p198) target = $region20
        $region19: #{transformer_forward.12} parent=11 // pred_region
          _
        $region20: #{transformer_forward.12} parent=11 // pred_fallthru
          _
      $region12: #{transformer_forward.12} parent=5 // pred_fallthru
        _
      %p201 = scmp.lt.s32.totalorder %s11, 3
      // Predicated region
      $region21: #{transformer_forward.12} parent=5 // pred_check
        %p202 = pneg %p201
      $region22: #{transformer_forward.12} parent=5 // pred_check_branch
        %204 = sbr.rel (%p202) target = $region24
      $region23: #{transformer_forward.12} parent=5 // pred_region
        // Predicated region
        $region25: #{transformer_forward.12} parent=23 // pred_check
          %p205 = pneg %p90
        $region26: #{transformer_forward.12} parent=23 // pred_check_branch
          %207 = sbr.rel (%p205) target = $region28
        $region27: #{transformer_forward.12} parent=23 // pred_region
          %s208 = sand.u32 %s80, 1
          %s209 = sand.u32 %s80, 1
          %s210 = smul.addr %s209, 64
          %s211 = scalar_lea.vmem [#allocation3], %s210
          %s212 = smul.addr %s19, 4
          %s213 = scalar_lea.vmem %s2, %s212
          // Predicated region
          $region29: #{transformer_forward.12} parent=27 // pred_check
            _
          $region30: #{transformer_forward.12} parent=27 // pred_check_branch
            %215 = sbr.rel (0) target = $region32
          $region31: #{transformer_forward.12} parent=27 // pred_region
            // Predicated region
            $region33: #{transformer_forward.12} parent=31 // pred_check
              _
            $region34: #{transformer_forward.12} parent=31 // pred_check_branch
              %217 = sbr.rel target = $region36
            $region35: #{transformer_forward.12} parent=31 // pred_region
              // Predicated region
              $region48: #{transformer_forward.12} parent=35 // pred_check
                _
              $region49: #{transformer_forward.12} parent=35 // pred_check_branch
                %263 = sbr.rel (0) target = $region51
              $region50: #{transformer_forward.12} parent=35 // pred_region
                loop: start=0, step=1, limit=1
                $region52: #{transformer_forward.12} parent=50 // loop_pre_header
                  _
                $region53: #{transformer_forward.12} parent=50 // loop_header
                  %s265 = sphi 0, %s269
                  %p266 = scmp.ge.s32.totalorder %s265, 1
                  %s270 = sphi %s213, %s213
                  %s271 = sphi %s211, %s211
                $region54: #{transformer_forward.12} parent=50 // loop_header_branch
                  %268 = sbr.rel (%p266) target = $region58
                $region55: #{transformer_forward.12} parent=50 // loop_body
                  _
                $region56: #{transformer_forward.12} parent=50 // loop_footer
                  %s269 = sadd.s32 1, %s265
                $region57: #{transformer_forward.12} parent=50 // loop_footer_branch
                  %264 = sbr.rel target = $region53
                $region58: #{transformer_forward.12} parent=50 // loop_exit
                  _
                %s273 = ssub.s32 16, 1
                loop: start=0, step=1, limit=1
                $region59: #{transformer_forward.12} parent=50 // loop_pre_header
                  _
                $region60: #{transformer_forward.12} parent=50 // loop_header
                  %s275 = sphi 0, %s279
                  %p276 = scmp.ge.s32.totalorder %s275, 1
                  %s280 = sphi %s213, %s213
                  %s281 = sphi %s211, %s211
                $region61: #{transformer_forward.12} parent=50 // loop_header_branch
                  %278 = sbr.rel (%p276) target = $region65
                $region62: #{transformer_forward.12} parent=50 // loop_body
                  %v282 = vld [vmem:[%s280] sm:%s273]
                  %283 = vst [vmem:[%s281] sm:%s273] %v282
                  %v284 = vld [vmem:[%s280 + $0xc] sm:%s273]
                  %285 = vst [vmem:[%s281 + $0x4] sm:%s273] %v284
                  %v286 = vld [vmem:[%s280 + $0x18] sm:%s273]
                  %287 = vst [vmem:[%s281 + $0x8] sm:%s273] %v286
                  %v288 = vld [vmem:[%s280 + $0x24] sm:%s273]
                  %289 = vst [vmem:[%s281 + $0xc] sm:%s273] %v288
                  %v290 = vld [vmem:[%s280 + $0x30] sm:%s273]
                  %291 = vst [vmem:[%s281 + $0x10] sm:%s273] %v290
                  %v292 = vld [vmem:[%s280 + $0x3c] sm:%s273]
                  %293 = vst [vmem:[%s281 + $0x14] sm:%s273] %v292
                  %v294 = vld [vmem:[%s280 + $0x48] sm:%s273]
                  %295 = vst [vmem:[%s281 + $0x18] sm:%s273] %v294
                  %v296 = vld [vmem:[%s280 + $0x54] sm:%s273]
                  %297 = vst [vmem:[%s281 + $0x1c] sm:%s273] %v296
                  %v298 = vld [vmem:[%s280 + $0x60] sm:%s273]
                  %299 = vst [vmem:[%s281 + $0x20] sm:%s273] %v298
                  %v300 = vld [vmem:[%s280 + $0x6c] sm:%s273]
                  %301 = vst [vmem:[%s281 + $0x24] sm:%s273] %v300
                  %v302 = vld [vmem:[%s280 + $0x78] sm:%s273]
                  %303 = vst [vmem:[%s281 + $0x28] sm:%s273] %v302
                  %v304 = vld [vmem:[%s280 + $0x84] sm:%s273]
                  %305 = vst [vmem:[%s281 + $0x2c] sm:%s273] %v304
                  %v306 = vld [vmem:[%s280 + $0x90] sm:%s273]
                  %307 = vst [vmem:[%s281 + $0x30] sm:%s273] %v306
                  %v308 = vld [vmem:[%s280 + $0x9c] sm:%s273]
                  %309 = vst [vmem:[%s281 + $0x34] sm:%s273] %v308
                  %v310 = vld [vmem:[%s280 + $0xa8] sm:%s273]
                  %311 = vst [vmem:[%s281 + $0x38] sm:%s273] %v310
                  %v312 = vld [vmem:[%s280 + $0xb4] sm:%s273]
                  %313 = vst [vmem:[%s281 + $0x3c] sm:%s273] %v312
                $region63: #{transformer_forward.12} parent=50 // loop_footer
                  %s279 = sadd.s32 1, %s275
                $region64: #{transformer_forward.12} parent=50 // loop_footer_branch
                  %274 = sbr.rel target = $region60
                $region65: #{transformer_forward.12} parent=50 // loop_exit
                  _
              $region51: #{transformer_forward.12} parent=35 // pred_fallthru
                _
            $region36: #{transformer_forward.12} parent=31 // pred_fallthru
              _
            // Predicated region
            $region37: #{transformer_forward.12} parent=31 // pred_check
              _
            $region38: #{transformer_forward.12} parent=31 // pred_check_branch
              %219 = sbr.rel (0) target = $region40
            $region39: #{transformer_forward.12} parent=31 // pred_region
              %s221 = ssub.s32 16, 1
              loop: start=0, step=1, limit=1
              $region41: #{transformer_forward.12} parent=39 // loop_pre_header
                _
              $region42: #{transformer_forward.12} parent=39 // loop_header
                %s223 = sphi 0, %s227
                %p224 = scmp.ge.s32.totalorder %s223, 1
                %s228 = sphi %s213, %s213
                %s229 = sphi %s211, %s211
              $region43: #{transformer_forward.12} parent=39 // loop_header_branch
                %226 = sbr.rel (%p224) target = $region47
              $region44: #{transformer_forward.12} parent=39 // loop_body
                %v230 = vld [vmem:[%s228] sm:%s221]
                %231 = vst [vmem:[%s229] sm:%s221] %v230
                %v232 = vld [vmem:[%s228 + $0xc] sm:%s221]
                %233 = vst [vmem:[%s229 + $0x4] sm:%s221] %v232
                %v234 = vld [vmem:[%s228 + $0x18] sm:%s221]
                %235 = vst [vmem:[%s229 + $0x8] sm:%s221] %v234
                %v236 = vld [vmem:[%s228 + $0x24] sm:%s221]
                %237 = vst [vmem:[%s229 + $0xc] sm:%s221] %v236
                %v238 = vld [vmem:[%s228 + $0x30] sm:%s221]
                %239 = vst [vmem:[%s229 + $0x10] sm:%s221] %v238
                %v240 = vld [vmem:[%s228 + $0x3c] sm:%s221]
                %241 = vst [vmem:[%s229 + $0x14] sm:%s221] %v240
                %v242 = vld [vmem:[%s228 + $0x48] sm:%s221]
                %243 = vst [vmem:[%s229 + $0x18] sm:%s221] %v242
                %v244 = vld [vmem:[%s228 + $0x54] sm:%s221]
                %245 = vst [vmem:[%s229 + $0x1c] sm:%s221] %v244
                %v246 = vld [vmem:[%s228 + $0x60] sm:%s221]
                %247 = vst [vmem:[%s229 + $0x20] sm:%s221] %v246
                %v248 = vld [vmem:[%s228 + $0x6c] sm:%s221]
                %249 = vst [vmem:[%s229 + $0x24] sm:%s221] %v248
                %v250 = vld [vmem:[%s228 + $0x78] sm:%s221]
                %251 = vst [vmem:[%s229 + $0x28] sm:%s221] %v250
                %v252 = vld [vmem:[%s228 + $0x84] sm:%s221]
                %253 = vst [vmem:[%s229 + $0x2c] sm:%s221] %v252
                %v254 = vld [vmem:[%s228 + $0x90] sm:%s221]
                %255 = vst [vmem:[%s229 + $0x30] sm:%s221] %v254
                %v256 = vld [vmem:[%s228 + $0x9c] sm:%s221]
                %257 = vst [vmem:[%s229 + $0x34] sm:%s221] %v256
                %v258 = vld [vmem:[%s228 + $0xa8] sm:%s221]
                %259 = vst [vmem:[%s229 + $0x38] sm:%s221] %v258
                %v260 = vld [vmem:[%s228 + $0xb4] sm:%s221]
                %261 = vst [vmem:[%s229 + $0x3c] sm:%s221] %v260
              $region45: #{transformer_forward.12} parent=39 // loop_footer
                %s227 = sadd.s32 1, %s223
              $region46: #{transformer_forward.12} parent=39 // loop_footer_branch
                %222 = sbr.rel target = $region42
              $region47: #{transformer_forward.12} parent=39 // loop_exit
                _
            $region40: #{transformer_forward.12} parent=31 // pred_fallthru
              _
          $region32: #{transformer_forward.12} parent=27 // pred_fallthru
            _
          %314 = vnop
        $region28: #{transformer_forward.12} parent=23 // pred_fallthru
          _
        // Predicated region
        $region66: #{transformer_forward.12} parent=23 // pred_check
          %p315 = pneg %p116
        $region67: #{transformer_forward.12} parent=23 // pred_check_branch
          %317 = sbr.rel (%p315) target = $region69
        $region68: #{transformer_forward.12} parent=23 // pred_region
          %s318 = sand.u32 %s106, 1
          %s319 = sand.u32 %s106, 1
          %s320 = smul.addr %s319, 64
          %s321 = scalar_lea.vmem [#allocation4], %s320
          %s322 = smul.addr %s19, 4
          %s323 = scalar_lea.vmem %s3, %s322
          // Predicated region
          $region70: #{transformer_forward.12} parent=68 // pred_check
            _
          $region71: #{transformer_forward.12} parent=68 // pred_check_branch
            %325 = sbr.rel (0) target = $region73
          $region72: #{transformer_forward.12} parent=68 // pred_region
            // Predicated region
            $region74: #{transformer_forward.12} parent=72 // pred_check
              _
            $region75: #{transformer_forward.12} parent=72 // pred_check_branch
              %327 = sbr.rel target = $region77
            $region76: #{transformer_forward.12} parent=72 // pred_region
              // Predicated region
              $region89: #{transformer_forward.12} parent=76 // pred_check
                _
              $region90: #{transformer_forward.12} parent=76 // pred_check_branch
                %373 = sbr.rel (0) target = $region92
              $region91: #{transformer_forward.12} parent=76 // pred_region
                loop: start=0, step=1, limit=1
                $region93: #{transformer_forward.12} parent=91 // loop_pre_header
                  _
                $region94: #{transformer_forward.12} parent=91 // loop_header
                  %s375 = sphi 0, %s379
                  %p376 = scmp.ge.s32.totalorder %s375, 1
                  %s380 = sphi %s323, %s323
                  %s381 = sphi %s321, %s321
                $region95: #{transformer_forward.12} parent=91 // loop_header_branch
                  %378 = sbr.rel (%p376) target = $region99
                $region96: #{transformer_forward.12} parent=91 // loop_body
                  _
                $region97: #{transformer_forward.12} parent=91 // loop_footer
                  %s379 = sadd.s32 1, %s375
                $region98: #{transformer_forward.12} parent=91 // loop_footer_branch
                  %374 = sbr.rel target = $region94
                $region99: #{transformer_forward.12} parent=91 // loop_exit
                  _
                %s383 = ssub.s32 16, 1
                loop: start=0, step=1, limit=1
                $region100: #{transformer_forward.12} parent=91 // loop_pre_header
                  _
                $region101: #{transformer_forward.12} parent=91 // loop_header
                  %s385 = sphi 0, %s389
                  %p386 = scmp.ge.s32.totalorder %s385, 1
                  %s390 = sphi %s323, %s323
                  %s391 = sphi %s321, %s321
                $region102: #{transformer_forward.12} parent=91 // loop_header_branch
                  %388 = sbr.rel (%p386) target = $region106
                $region103: #{transformer_forward.12} parent=91 // loop_body
                  %v392 = vld [vmem:[%s390] sm:%s383]
                  %393 = vst [vmem:[%s391] sm:%s383] %v392
                  %v394 = vld [vmem:[%s390 + $0xc] sm:%s383]
                  %395 = vst [vmem:[%s391 + $0x4] sm:%s383] %v394
                  %v396 = vld [vmem:[%s390 + $0x18] sm:%s383]
                  %397 = vst [vmem:[%s391 + $0x8] sm:%s383] %v396
                  %v398 = vld [vmem:[%s390 + $0x24] sm:%s383]
                  %399 = vst [vmem:[%s391 + $0xc] sm:%s383] %v398
                  %v400 = vld [vmem:[%s390 + $0x30] sm:%s383]
                  %401 = vst [vmem:[%s391 + $0x10] sm:%s383] %v400
                  %v402 = vld [vmem:[%s390 + $0x3c] sm:%s383]
                  %403 = vst [vmem:[%s391 + $0x14] sm:%s383] %v402
                  %v404 = vld [vmem:[%s390 + $0x48] sm:%s383]
                  %405 = vst [vmem:[%s391 + $0x18] sm:%s383] %v404
                  %v406 = vld [vmem:[%s390 + $0x54] sm:%s383]
                  %407 = vst [vmem:[%s391 + $0x1c] sm:%s383] %v406
                  %v408 = vld [vmem:[%s390 + $0x60] sm:%s383]
                  %409 = vst [vmem:[%s391 + $0x20] sm:%s383] %v408
                  %v410 = vld [vmem:[%s390 + $0x6c] sm:%s383]
                  %411 = vst [vmem:[%s391 + $0x24] sm:%s383] %v410
                  %v412 = vld [vmem:[%s390 + $0x78] sm:%s383]
                  %413 = vst [vmem:[%s391 + $0x28] sm:%s383] %v412
                  %v414 = vld [vmem:[%s390 + $0x84] sm:%s383]
                  %415 = vst [vmem:[%s391 + $0x2c] sm:%s383] %v414
                  %v416 = vld [vmem:[%s390 + $0x90] sm:%s383]
                  %417 = vst [vmem:[%s391 + $0x30] sm:%s383] %v416
                  %v418 = vld [vmem:[%s390 + $0x9c] sm:%s383]
                  %419 = vst [vmem:[%s391 + $0x34] sm:%s383] %v418
                  %v420 = vld [vmem:[%s390 + $0xa8] sm:%s383]
                  %421 = vst [vmem:[%s391 + $0x38] sm:%s383] %v420
                  %v422 = vld [vmem:[%s390 + $0xb4] sm:%s383]
                  %423 = vst [vmem:[%s391 + $0x3c] sm:%s383] %v422
                $region104: #{transformer_forward.12} parent=91 // loop_footer
                  %s389 = sadd.s32 1, %s385
                $region105: #{transformer_forward.12} parent=91 // loop_footer_branch
                  %384 = sbr.rel target = $region101
                $region106: #{transformer_forward.12} parent=91 // loop_exit
                  _
              $region92: #{transformer_forward.12} parent=76 // pred_fallthru
                _
            $region77: #{transformer_forward.12} parent=72 // pred_fallthru
              _
            // Predicated region
            $region78: #{transformer_forward.12} parent=72 // pred_check
              _
            $region79: #{transformer_forward.12} parent=72 // pred_check_branch
              %329 = sbr.rel (0) target = $region81
            $region80: #{transformer_forward.12} parent=72 // pred_region
              %s331 = ssub.s32 16, 1
              loop: start=0, step=1, limit=1
              $region82: #{transformer_forward.12} parent=80 // loop_pre_header
                _
              $region83: #{transformer_forward.12} parent=80 // loop_header
                %s333 = sphi 0, %s337
                %p334 = scmp.ge.s32.totalorder %s333, 1
                %s338 = sphi %s323, %s323
                %s339 = sphi %s321, %s321
              $region84: #{transformer_forward.12} parent=80 // loop_header_branch
                %336 = sbr.rel (%p334) target = $region88
              $region85: #{transformer_forward.12} parent=80 // loop_body
                %v340 = vld [vmem:[%s338] sm:%s331]
                %341 = vst [vmem:[%s339] sm:%s331] %v340
                %v342 = vld [vmem:[%s338 + $0xc] sm:%s331]
                %343 = vst [vmem:[%s339 + $0x4] sm:%s331] %v342
                %v344 = vld [vmem:[%s338 + $0x18] sm:%s331]
                %345 = vst [vmem:[%s339 + $0x8] sm:%s331] %v344
                %v346 = vld [vmem:[%s338 + $0x24] sm:%s331]
                %347 = vst [vmem:[%s339 + $0xc] sm:%s331] %v346
                %v348 = vld [vmem:[%s338 + $0x30] sm:%s331]
                %349 = vst [vmem:[%s339 + $0x10] sm:%s331] %v348
                %v350 = vld [vmem:[%s338 + $0x3c] sm:%s331]
                %351 = vst [vmem:[%s339 + $0x14] sm:%s331] %v350
                %v352 = vld [vmem:[%s338 + $0x48] sm:%s331]
                %353 = vst [vmem:[%s339 + $0x18] sm:%s331] %v352
                %v354 = vld [vmem:[%s338 + $0x54] sm:%s331]
                %355 = vst [vmem:[%s339 + $0x1c] sm:%s331] %v354
                %v356 = vld [vmem:[%s338 + $0x60] sm:%s331]
                %357 = vst [vmem:[%s339 + $0x20] sm:%s331] %v356
                %v358 = vld [vmem:[%s338 + $0x6c] sm:%s331]
                %359 = vst [vmem:[%s339 + $0x24] sm:%s331] %v358
                %v360 = vld [vmem:[%s338 + $0x78] sm:%s331]
                %361 = vst [vmem:[%s339 + $0x28] sm:%s331] %v360
                %v362 = vld [vmem:[%s338 + $0x84] sm:%s331]
                %363 = vst [vmem:[%s339 + $0x2c] sm:%s331] %v362
                %v364 = vld [vmem:[%s338 + $0x90] sm:%s331]
                %365 = vst [vmem:[%s339 + $0x30] sm:%s331] %v364
                %v366 = vld [vmem:[%s338 + $0x9c] sm:%s331]
                %367 = vst [vmem:[%s339 + $0x34] sm:%s331] %v366
                %v368 = vld [vmem:[%s338 + $0xa8] sm:%s331]
                %369 = vst [vmem:[%s339 + $0x38] sm:%s331] %v368
                %v370 = vld [vmem:[%s338 + $0xb4] sm:%s331]
                %371 = vst [vmem:[%s339 + $0x3c] sm:%s331] %v370
              $region86: #{transformer_forward.12} parent=80 // loop_footer
                %s337 = sadd.s32 1, %s333
              $region87: #{transformer_forward.12} parent=80 // loop_footer_branch
                %332 = sbr.rel target = $region83
              $region88: #{transformer_forward.12} parent=80 // loop_exit
                _
            $region81: #{transformer_forward.12} parent=72 // pred_fallthru
              _
          $region73: #{transformer_forward.12} parent=68 // pred_fallthru
            _
          %424 = vnop
        $region69: #{transformer_forward.12} parent=23 // pred_fallthru
          _
        // Predicated region
        $region107: #{transformer_forward.12} parent=23 // pred_check
          %p425 = pneg %p142
        $region108: #{transformer_forward.12} parent=23 // pred_check_branch
          %427 = sbr.rel (%p425) target = $region110
        $region109: #{transformer_forward.12} parent=23 // pred_region
          %s428 = smul.u32 16, %s19
          %p429 = scmp.lt.s32.totalorder %s428, 47
          %s430 = scalar_select %p429, %s428, 47
          %s431 = smul.addr %s430, 4
          %s432 = scalar_lea.vmem %s4, %s431
          %s433 = smul.u32 16, %s19
        $region110: #{transformer_forward.12} parent=23 // pred_fallthru
          _
      $region24: #{transformer_forward.12} parent=5 // pred_fallthru
        _
      %p434 = scmp.le.s32.totalorder 1, %s11
      %p435 = scmp.lt.s32.totalorder %s11, 4
      %p436 = pnand %p434, %p435
      %p437 = pneg %p436
      // Predicated region
      $region111: #{transformer_forward.12} parent=5 // pred_check
        _
      $region112: #{transformer_forward.12} parent=5 // pred_check_branch
        %439 = sbr.rel (%p436) target = $region114
      $region113: #{transformer_forward.12} parent=5 // pred_region
        %s440 = ssub.s32 %s11, 1
        %s441 = sand.u32 %s83, 1
        %s442 = sand.u32 %s83, 1
        %s443 = smul.addr %s442, 64
        %s444 = scalar_lea.vmem [#allocation3], %s443
        // Predicated region
        $region115: #{transformer_forward.12} parent=113 // pred_check
          %p445 = pneg %p96
        $region116: #{transformer_forward.12} parent=113 // pred_check_branch
          %447 = sbr.rel (%p445) target = $region118
        $region117: #{transformer_forward.12} parent=113 // pred_region
          _
        $region118: #{transformer_forward.12} parent=113 // pred_fallthru
          _
        %s448 = sand.u32 %s109, 1
        %s449 = sand.u32 %s109, 1
        %s450 = smul.addr %s449, 64
        %s451 = scalar_lea.vmem [#allocation4], %s450
        // Predicated region
        $region119: #{transformer_forward.12} parent=113 // pred_check
          %p452 = pneg %p122
        $region120: #{transformer_forward.12} parent=113 // pred_check_branch
          %454 = sbr.rel (%p452) target = $region122
        $region121: #{transformer_forward.12} parent=113 // pred_region
          _
        $region122: #{transformer_forward.12} parent=113 // pred_fallthru
          _
        %s455 = smul.u32 2, %s20
        %p456 = scmp.lt.s32.totalorder %s455, 1
        %s457 = scalar_select %p456, %s455, 1
        %s458 = smul.addr %s457, 8
        %s459 = scalar_lea.vmem %s0, %s458
        %p460 = pneg %p49
        %p461 = pneg %p46
        %p462 = pneg %p70
        %p463 = pneg %p67
        %s464 = sand.u32 %s83, 1
        %s465 = sand.u32 %s83, 1
        %s466 = smul.addr %s465, 64
        %s467 = scalar_lea.vmem [#allocation3], %s466
        %p468 = pneg %p96
        %p469 = pneg %p93
        %s470 = sand.u32 %s109, 1
        %s471 = sand.u32 %s109, 1
        %s472 = smul.addr %s471, 64
        %s473 = scalar_lea.vmem [#allocation4], %s472
        %p474 = pneg %p122
        %p475 = pneg %p119
        %s476 = smul.u32 16, %s21
        %p477 = scmp.lt.s32.totalorder %s476, 47
        %s478 = scalar_select %p477, %s476, 47
        %s479 = smul.addr %s478, 4
        %s480 = scalar_lea.vmem %s4, %s479
        %p481 = pneg %p148
        %p482 = pneg %p145
        %p483 = pneg %p174
        %p484 = pneg %p171
        %s485 = smul.u32 2, %s20
        %p486 = scmp.lt.s32.totalorder %s485, 1
        %s487 = scalar_select %p486, %s485, 1
        %s488 = smul.addr %s487, 8
        %s489 = scalar_lea.vmem %s5, %s488
        %s490 = smul.u32 2, %s20
        %p491 = scmp.lt.s32.totalorder %s490, 1
        %s492 = scalar_select %p491, %s490, 1
        %s493 = smul.addr %s492, 8
        %s494 = scalar_lea.vmem %s0, %s493
        %s495 = smul.u32 2, %s20
        %s496 = smul.u32 16, %s21
        %p497 = scmp.lt.s32.totalorder %s496, 47
        %s498 = scalar_select %p497, %s496, 47
        %s499 = smul.addr %s498, 4
        %s500 = scalar_lea.vmem %s4, %s499
        %s501 = smul.u32 16, %s21
        %s502 = smul.u32 2, %s20
        %p503 = scmp.lt.s32.totalorder %s502, 1
        %s504 = scalar_select %p503, %s502, 1
        %s505 = smul.addr %s504, 8
        %s506 = scalar_lea.vmem %s5, %s505
        %s507 = smul.u32 2, %s20
        %p508 = scmp.eq.s32.totalorder %s21, 0
        // Predicated region
        $region123: #{transformer_forward.12} parent=113 // pred_check
          %p509 = pneg %p508
        $region124: #{transformer_forward.12} parent=113 // pred_check_branch
          %511 = sbr.rel (%p509) target = $region126
        $region125: #{transformer_forward.12} parent=113 // pred_region
          %512 = vst [vmem:[#allocation2] sm:$0xff] 0.0
          %513 = vst [vmem:[#allocation2 + $0x8] sm:$0xff] 0.0
        $region126: #{transformer_forward.12} parent=113 // pred_fallthru
          _
        %v514 = vld [vmem:[%s494] sm:$0xff]
        %v515 = vld [vmem:[%s494 + $0x8] sm:$0xff]
        %v516 = vmul.f32 %v514, %v514
        %v517 = vmul.f32 %v515, %v515
        %518 = vadd.xlane.f32.xlu0 %v516
        %v519 = vpop.xlane.xlu0 %518
        %520 = vadd.xlane.f32.xlu0 %v517
        %v521 = vpop.xlane.xlu0 %520
        %v522 = vrcp.pop 128.0
        %v523 = vmul.f32 128.0, %v522
        %v524 = vsub.f32 1.0, %v523
        %v525 = vmul.f32 %v522, %v524
        %v526 = vadd.f32 %v522, %v525
        %vm527 = vweird.f32 %v522
        %v528 = vsel %vm527, %v522, %v526
        %v529 = vmul.f32 %v519, %v528
        %v530 = vmul.f32 %v521, %v528
        %v531 = vadd.f32 %v529, 1e-05
        %v532 = vadd.f32 %v530, 1e-05
        %v533 = vrsqrt.pop %v531
        %v534 = vmul.f32 %v533, %v531
        %v535 = vmul.f32 %v534, %v533
        %v536 = vmul.f32 0.5, %v535
        %v537 = vsub.f32 1.5, %v536
        %v538 = vmul.f32 %v533, %v537
        %vm539 = vweird.f32 %v531
        %vm540 = vweird.f32 %v533
        %vm541 = vmor %vm539, %vm540
        %v542 = vsel %vm541, %v533, %v538
        %v543 = vrsqrt.pop %v532
        %v544 = vmul.f32 %v543, %v532
        %v545 = vmul.f32 %v544, %v543
        %v546 = vmul.f32 0.5, %v545
        %v547 = vsub.f32 1.5, %v546
        %v548 = vmul.f32 %v543, %v547
        %vm549 = vweird.f32 %v532
        %vm550 = vweird.f32 %v543
        %vm551 = vmor %vm549, %vm550
        %v552 = vsel %vm551, %v543, %v548
        %v553 = vmul.f32 %v514, %v542
        %v554 = vmul.f32 %v515, %v552
        %v555 = vld [vmem:[%s1] sm:$0x1]
        %v557 = vperm.slane %v555, 0
        %v559 = vmul.f32 %v553, %v557
        %v560 = vmul.f32 %v554, %v557
        %v561 = vpack.c.bf16 %v560, %v559
        %v562 = vld [vmem:[%s444] sm:$0xf]
        %v563 = vld [vmem:[%s444 + $0x4] sm:$0xf]
        %v564 = vld [vmem:[%s444 + $0x8] sm:$0xf]
        %v565 = vld [vmem:[%s444 + $0xc] sm:$0xf]
        %v566 = vld [vmem:[%s444 + $0x10] sm:$0xf]
        %v567 = vld [vmem:[%s444 + $0x14] sm:$0xf]
        %v568 = vld [vmem:[%s444 + $0x18] sm:$0xf]
        %v569 = vld [vmem:[%s444 + $0x1c] sm:$0xf]
        %v570 = vld [vmem:[%s444 + $0x20] sm:$0xf]
        %v571 = vld [vmem:[%s444 + $0x24] sm:$0xf]
        %v572 = vld [vmem:[%s444 + $0x28] sm:$0xf]
        %v573 = vld [vmem:[%s444 + $0x2c] sm:$0xf]
        %v574 = vld [vmem:[%s444 + $0x30] sm:$0xf]
        %v575 = vld [vmem:[%s444 + $0x34] sm:$0xf]
        %v576 = vld [vmem:[%s444 + $0x38] sm:$0xf]
        %v577 = vld [vmem:[%s444 + $0x3c] sm:$0xf]
        %v594 = vunpack.c.l.b16 %v562
        %v595 = vunpack.c.l.b16 %v563
        %v596 = vunpack.c.l.b16 %v564
        %v597 = vunpack.c.l.b16 %v565
        %v598 = vunpack.c.l.b16 %v566
        %v599 = vunpack.c.l.b16 %v567
        %v600 = vunpack.c.l.b16 %v568
        %v601 = vunpack.c.l.b16 %v569
        %v602 = vunpack.c.l.b16 %v570
        %v603 = vunpack.c.l.b16 %v571
        %v604 = vunpack.c.l.b16 %v572
        %v605 = vunpack.c.l.b16 %v573
        %v606 = vunpack.c.l.b16 %v574
        %v607 = vunpack.c.l.b16 %v575
        %v608 = vunpack.c.l.b16 %v576
        %v609 = vunpack.c.l.b16 %v577
        %v610 = vpack.c.b16 %v595, %v594
        %v611 = vpack.c.b16 %v597, %v596
        %v612 = vpack.c.b16 %v599, %v598
        %v613 = vpack.c.b16 %v601, %v600
        %v614 = vpack.c.b16 %v603, %v602
        %v615 = vpack.c.b16 %v605, %v604
        %v616 = vpack.c.b16 %v607, %v606
        %v617 = vpack.c.b16 %v609, %v608
        %626 = vmatpush.bf16.msra.mxu0 %v617
        %627 = vmatpush.bf16.msra.mxu0 %v616
        %628 = vmatpush.bf16.msra.mxu0 %v615
        %629 = vmatpush.bf16.msra.mxu0 %v614
        %630 = vmatpush.bf16.msra.mxu0 %v613
        %631 = vmatpush.bf16.msra.mxu0 %v612
        %632 = vmatpush.bf16.msra.mxu0 %v611
        %633 = vmatpush.bf16.msra.mxu0 %v610
        %634 = vmatmul.bf16.gmra.mxu0 %v561
        %v635 = vpop.f32.mrf.mxu0
        %v636 = vadd.f32 0.0, %v635
        %v637 = vpop.f32.mrf.mxu0
        %v638 = vadd.f32 0.0, %v637
        %639 = vdwg.mxu0
        %v640 = vld [vmem:[%s451] sm:$0xf]
        %v641 = vld [vmem:[%s451 + $0x4] sm:$0xf]
        %v642 = vld [vmem:[%s451 + $0x8] sm:$0xf]
        %v643 = vld [vmem:[%s451 + $0xc] sm:$0xf]
        %v644 = vld [vmem:[%s451 + $0x10] sm:$0xf]
        %v645 = vld [vmem:[%s451 + $0x14] sm:$0xf]
        %v646 = vld [vmem:[%s451 + $0x18] sm:$0xf]
        %v647 = vld [vmem:[%s451 + $0x1c] sm:$0xf]
        %v648 = vld [vmem:[%s451 + $0x20] sm:$0xf]
        %v649 = vld [vmem:[%s451 + $0x24] sm:$0xf]
        %v650 = vld [vmem:[%s451 + $0x28] sm:$0xf]
        %v651 = vld [vmem:[%s451 + $0x2c] sm:$0xf]
        %v652 = vld [vmem:[%s451 + $0x30] sm:$0xf]
        %v653 = vld [vmem:[%s451 + $0x34] sm:$0xf]
        %v654 = vld [vmem:[%s451 + $0x38] sm:$0xf]
        %v655 = vld [vmem:[%s451 + $0x3c] sm:$0xf]
        %v672 = vunpack.c.l.b16 %v640
        %v673 = vunpack.c.l.b16 %v641
        %v674 = vunpack.c.l.b16 %v642
        %v675 = vunpack.c.l.b16 %v643
        %v676 = vunpack.c.l.b16 %v644
        %v677 = vunpack.c.l.b16 %v645
        %v678 = vunpack.c.l.b16 %v646
        %v679 = vunpack.c.l.b16 %v647
        %v680 = vunpack.c.l.b16 %v648
        %v681 = vunpack.c.l.b16 %v649
        %v682 = vunpack.c.l.b16 %v650
        %v683 = vunpack.c.l.b16 %v651
        %v684 = vunpack.c.l.b16 %v652
        %v685 = vunpack.c.l.b16 %v653
        %v686 = vunpack.c.l.b16 %v654
        %v687 = vunpack.c.l.b16 %v655
        %v688 = vpack.c.b16 %v673, %v672
        %v689 = vpack.c.b16 %v675, %v674
        %v690 = vpack.c.b16 %v677, %v676
        %v691 = vpack.c.b16 %v679, %v678
        %v692 = vpack.c.b16 %v681, %v680
        %v693 = vpack.c.b16 %v683, %v682
        %v694 = vpack.c.b16 %v685, %v684
        %v695 = vpack.c.b16 %v687, %v686
        %704 = vmatpush.bf16.msra.mxu0 %v695
        %705 = vmatpush.bf16.msra.mxu0 %v694
        %706 = vmatpush.bf16.msra.mxu0 %v693
        %707 = vmatpush.bf16.msra.mxu0 %v692
        %708 = vmatpush.bf16.msra.mxu0 %v691
        %709 = vmatpush.bf16.msra.mxu0 %v690
        %710 = vmatpush.bf16.msra.mxu0 %v689
        %711 = vmatpush.bf16.msra.mxu0 %v688
        %712 = vmatmul.bf16.gmra.mxu0 %v561
        %v713 = vpop.f32.mrf.mxu0
        %v714 = vadd.f32 0.0, %v713
        %v715 = vpop.f32.mrf.mxu0
        %v716 = vadd.f32 0.0, %v715
        %717 = vdwg.mxu0
        %v718 = vxor.u32 %v636, 2147483648
        %v719 = vxor.u32 %v638, 2147483648
        %v720 = vmul.f32 %v718, 1.442695
        %v721 = vpow.pop %v720
        %v722 = vmul.f32 %v719, 1.442695
        %v723 = vpow.pop %v722
        %v724 = vadd.f32 %v721, 1.0
        %v725 = vadd.f32 %v723, 1.0
        %v726 = vrcp.pop %v724
        %v727 = vmul.f32 %v724, %v726
        %v728 = vsub.f32 1.0, %v727
        %v729 = vmul.f32 %v726, %v728
        %v730 = vadd.f32 %v726, %v729
        %vm731 = vweird.f32 %v724
        %vm732 = vweird.f32 %v726
        %vm733 = vmor %vm731, %vm732
        %v734 = vsel %vm733, %v726, %v730
        %v735 = vand.u32 2147483647, %v724
        %vm736 = vcmp.eq.f32.partialorder %v735, 8.507059e+37
        %v737 = vand.u32 %v724, 2147483648
        %v738 = vor.u32 1.1754944e-38, %v737
        %v739 = vsel %vm736, %v738, %v734
        %v740 = vmul.f32 1.0, %v739
        %v741 = vrcp.pop %v725
        %v742 = vmul.f32 %v725, %v741
        %v743 = vsub.f32 1.0, %v742
        %v744 = vmul.f32 %v741, %v743
        %v745 = vadd.f32 %v741, %v744
        %vm746 = vweird.f32 %v725
        %vm747 = vweird.f32 %v741
        %vm748 = vmor %vm746, %vm747
        %v749 = vsel %vm748, %v741, %v745
        %v750 = vand.u32 2147483647, %v725
        %vm751 = vcmp.eq.f32.partialorder %v750, 8.507059e+37
        %v752 = vand.u32 %v725, 2147483648
        %v753 = vor.u32 1.1754944e-38, %v752
        %v754 = vsel %vm751, %v753, %v749
        %v755 = vmul.f32 1.0, %v754
        %v756 = vmul.f32 %v636, %v740
        %v757 = vmul.f32 %v638, %v755
        %v758 = vmul.f32 %v756, %v714
        %v759 = vmul.f32 %v757, %v716
        %v760 = vpack.c.bf16 %v759, %v758
        %v761 = vld [vmem:[#allocation2] sm:$0xff]
        %v762 = vld [vmem:[#allocation2 + $0x8] sm:$0xff]
        %v763 = vld [vmem:[%s500] sm:$0xf]
        %v764 = vld [vmem:[%s500 + $0x4] sm:$0xf]
        %v765 = vld [vmem:[%s500 + $0x8] sm:$0xf]
        %v766 = vld [vmem:[%s500 + $0xc] sm:$0xf]
        %v767 = vld [vmem:[%s500 + $0x10] sm:$0xf]
        %v768 = vld [vmem:[%s500 + $0x14] sm:$0xf]
        %v769 = vld [vmem:[%s500 + $0x18] sm:$0xf]
        %v770 = vld [vmem:[%s500 + $0x1c] sm:$0xf]
        %v771 = vld [vmem:[%s500 + $0x20] sm:$0xf]
        %v772 = vld [vmem:[%s500 + $0x24] sm:$0xf]
        %v773 = vld [vmem:[%s500 + $0x28] sm:$0xf]
        %v774 = vld [vmem:[%s500 + $0x2c] sm:$0xf]
        %v775 = vld [vmem:[%s500 + $0x30] sm:$0xf]
        %v776 = vld [vmem:[%s500 + $0x34] sm:$0xf]
        %v777 = vld [vmem:[%s500 + $0x38] sm:$0xf]
        %v778 = vld [vmem:[%s500 + $0x3c] sm:$0xf]
        %v795 = vunpack.c.l.b16 %v763
        %v796 = vunpack.c.l.b16 %v764
        %v797 = vunpack.c.l.b16 %v765
        %v798 = vunpack.c.l.b16 %v766
        %v799 = vunpack.c.l.b16 %v767
        %v800 = vunpack.c.l.b16 %v768
        %v801 = vunpack.c.l.b16 %v769
        %v802 = vunpack.c.l.b16 %v770
        %v803 = vunpack.c.l.b16 %v771
        %v804 = vunpack.c.l.b16 %v772
        %v805 = vunpack.c.l.b16 %v773
        %v806 = vunpack.c.l.b16 %v774
        %v807 = vunpack.c.l.b16 %v775
        %v808 = vunpack.c.l.b16 %v776
        %v809 = vunpack.c.l.b16 %v777
        %v810 = vunpack.c.l.b16 %v778
        %v811 = vpack.c.b16 %v796, %v795
        %v812 = vpack.c.b16 %v798, %v797
        %v813 = vpack.c.b16 %v800, %v799
        %v814 = vpack.c.b16 %v802, %v801
        %v815 = vpack.c.b16 %v804, %v803
        %v816 = vpack.c.b16 %v806, %v805
        %v817 = vpack.c.b16 %v808, %v807
        %v818 = vpack.c.b16 %v810, %v809
        %827 = vmatpush.bf16.msra.mxu0 %v818
        %828 = vmatpush.bf16.msra.mxu0 %v817
        %829 = vmatpush.bf16.msra.mxu0 %v816
        %830 = vmatpush.bf16.msra.mxu0 %v815
        %831 = vmatpush.bf16.msra.mxu0 %v814
        %832 = vmatpush.bf16.msra.mxu0 %v813
        %833 = vmatpush.bf16.msra.mxu0 %v812
        %834 = vmatpush.bf16.msra.mxu0 %v811
        %835 = vmatmul.bf16.gmra.mxu0 %v760
        %v836 = vpop.f32.mrf.mxu0
        %v837 = vadd.f32 0.0, %v836
        %v838 = vpop.f32.mrf.mxu0
        %v839 = vadd.f32 0.0, %v838
        %840 = vdwg.mxu0
        %v841 = vadd.f32 %v761, %v837
        %v842 = vadd.f32 %v762, %v839
        %843 = vst [vmem:[#allocation2] sm:$0xff] %v841
        %844 = vst [vmem:[#allocation2 + $0x8] sm:$0xff] %v842
        %p845 = scmp.eq.s32.totalorder %s21, 2
        // Predicated region
        $region127: #{transformer_forward.12} parent=113 // pred_check
          %p846 = pneg %p845
        $region128: #{transformer_forward.12} parent=113 // pred_check_branch
          %848 = sbr.rel (%p846) target = $region130
        $region129: #{transformer_forward.12} parent=113 // pred_region
          %v849 = vld [vmem:[#allocation2] sm:$0xff]
          %v850 = vld [vmem:[#allocation2 + $0x8] sm:$0xff]
          %v851 = vadd.f32 %v514, %v849
          %v852 = vadd.f32 %v515, %v850
          %853 = vst [vmem:[%s506] sm:$0xff] %v851
          %854 = vst [vmem:[%s506 + $0x8] sm:$0xff] %v852
        $region130: #{transformer_forward.12} parent=113 // pred_fallthru
          _
        %s855 = smul.u32 2, %s20
        %p856 = scmp.lt.s32.totalorder %s855, 1
        %s857 = scalar_select %p856, %s855, 1
        %s858 = smul.addr %s857, 8
        %s859 = scalar_lea.vmem %s5, %s858
        // Predicated region
        $region131: #{transformer_forward.12} parent=113 // pred_check
          %p860 = pneg %p171
        $region132: #{transformer_forward.12} parent=113 // pred_check_branch
          %862 = sbr.rel (%p860) target = $region134
        $region133: #{transformer_forward.12} parent=113 // pred_region
          %s863 = smul.u32 2, %s20
        $region134: #{transformer_forward.12} parent=113 // pred_fallthru
          _
        // Predicated region
        $region135: #{transformer_forward.12} parent=113 // pred_check
          %p864 = pneg %p171
        $region136: #{transformer_forward.12} parent=113 // pred_check_branch
          %866 = sbr.rel (%p864) target = $region138
        $region137: #{transformer_forward.12} parent=113 // pred_region
          %s867 = smul.u32 2, %s20
          %p868 = scmp.lt.s32.totalorder %s867, 1
          %s869 = scalar_select %p868, %s867, 1
          %s870 = smul.addr %s869, 8
          %s871 = scalar_lea.vmem %s5, %s870
        $region138: #{transformer_forward.12} parent=113 // pred_fallthru
          _
      $region114: #{transformer_forward.12} parent=5 // pred_fallthru
        _
      %p872 = scmp.le.s32.totalorder 2, %s11
      // Predicated region
      $region139: #{transformer_forward.12} parent=5 // pred_check
        %p873 = pneg %p872
      $region140: #{transformer_forward.12} parent=5 // pred_check_branch
        %875 = sbr.rel (%p873) target = $region142
      $region141: #{transformer_forward.12} parent=5 // pred_region
        %s876 = ssub.s32 %s11, 2
      $region142: #{transformer_forward.12} parent=5 // pred_fallthru
        _
    $region6: #{transformer_forward.12} parent=1 // loop_footer
      %s15 = sadd.s32 1, %s11
    $region7: #{transformer_forward.12} parent=1 // loop_footer_branch
      %10 = sbr.rel target = $region3
    $region8: #{transformer_forward.12} parent=1 // loop_exit
      _

// kernel: transformer_forward.9
$region0: #{transformer_forward.9}
  #allocation0 [shape = 'u32[]', space=smem, size = 0x4, offset = 0x4, fixed_abs, tag = 'smem constant byte address 0x4 - core index']
  #allocation1 [shape = 'u32[72,128]{1,0:T(1,128)}', space=vmem, size = 0x9000, scoped, tag = 'internal scratch']
  %s0 = inlined_call_operand.vmem [shape: f32[16,128], index: 0, kind: input, shape index: {}]
  %s1 = inlined_call_operand.vmem [shape: f32[1,128], index: 1, kind: input, shape index: {}]
  %s2 = inlined_call_operand.vmem [shape: bf16[128,256], index: 2, kind: input, shape index: {}]
  %s3 = inlined_call_operand.vmem [shape: f32[16,256], index: 3, kind: output, shape index: {}]
  %s4 = sld [smem:[#allocation0]]
  $region22: #{transformer_forward.9} parent=0
    _
  %s6 = ssub.s32 1, %s4
  %s7 = scalar_select 0, %s6, %s4
  // Predicated region
  $region2: #{transformer_forward.9} parent=0 // pred_check
    _
  $region3: #{transformer_forward.9} parent=0 // pred_check_branch
    %9 = sbr.rel (0) target = $region5
  $region4: #{transformer_forward.9} parent=0 // pred_region
    _
  $region5: #{transformer_forward.9} parent=0 // pred_fallthru
    _
  // Predicated region
  $region6: #{transformer_forward.9} parent=0 // pred_check
    _
  $region7: #{transformer_forward.9} parent=0 // pred_check_branch
    %11 = sbr.rel (0) target = $region9
  $region8: #{transformer_forward.9} parent=0 // pred_region
    _
  $region9: #{transformer_forward.9} parent=0 // pred_fallthru
    _
  // Predicated region
  $region10: #{transformer_forward.9} parent=0 // pred_check
    _
  $region11: #{transformer_forward.9} parent=0 // pred_check_branch
    %13 = sbr.rel (0) target = $region13
  $region12: #{transformer_forward.9} parent=0 // pred_region
    _
  $region13: #{transformer_forward.9} parent=0 // pred_fallthru
    _
  %v14 = vld [vmem:[%s0] sm:$0xff]
  %v15 = vld [vmem:[%s0 + $0x8] sm:$0xff]
  %v16 = vmul.f32 %v14, %v14
  %v17 = vmul.f32 %v15, %v15
  %18 = vadd.xlane.f32.xlu0 %v16
  %v19 = vpop.xlane.xlu0 %18
  %20 = vadd.xlane.f32.xlu0 %v17
  %v21 = vpop.xlane.xlu0 %20
  %v22 = vrcp.pop 128.0
  %v23 = vmul.f32 128.0, %v22
  %v24 = vsub.f32 1.0, %v23
  %v25 = vmul.f32 %v22, %v24
  %v26 = vadd.f32 %v22, %v25
  %vm27 = vweird.f32 %v22
  %v28 = vsel %vm27, %v22, %v26
  %v29 = vmul.f32 %v19, %v28
  %v30 = vmul.f32 %v21, %v28
  %v31 = vadd.f32 %v29, 1e-05
  %v32 = vadd.f32 %v30, 1e-05
  %v33 = vrsqrt.pop %v31
  %v34 = vmul.f32 %v33, %v31
  %v35 = vmul.f32 %v34, %v33
  %v36 = vmul.f32 0.5, %v35
  %v37 = vsub.f32 1.5, %v36
  %v38 = vmul.f32 %v33, %v37
  %vm39 = vweird.f32 %v31
  %vm40 = vweird.f32 %v33
  %vm41 = vmor %vm39, %vm40
  %v42 = vsel %vm41, %v33, %v38
  %v43 = vrsqrt.pop %v32
  %v44 = vmul.f32 %v43, %v32
  %v45 = vmul.f32 %v44, %v43
  %v46 = vmul.f32 0.5, %v45
  %v47 = vsub.f32 1.5, %v46
  %v48 = vmul.f32 %v43, %v47
  %vm49 = vweird.f32 %v32
  %vm50 = vweird.f32 %v43
  %vm51 = vmor %vm49, %vm50
  %v52 = vsel %vm51, %v43, %v48
  %v53 = vmul.f32 %v14, %v42
  %v54 = vmul.f32 %v15, %v52
  %v55 = vld [vmem:[%s1] sm:$0x1]
  %v57 = vperm.slane %v55, 0
  %v59 = vmul.f32 %v53, %v57
  %v60 = vmul.f32 %v54, %v57
  %v61 = vpack.c.bf16 %v60, %v59
  %v62 = vld [vmem:[%s2] sm:$0xff]
  %v63 = vld [vmem:[%s2 + $0x8] sm:$0xff]
  %v64 = vld [vmem:[%s2 + $0x10] sm:$0xff]
  %v65 = vld [vmem:[%s2 + $0x18] sm:$0xff]
  %v66 = vld [vmem:[%s2 + $0x20] sm:$0xff]
  %v67 = vld [vmem:[%s2 + $0x28] sm:$0xff]
  %v68 = vld [vmem:[%s2 + $0x30] sm:$0xff]
  %v69 = vld [vmem:[%s2 + $0x38] sm:$0xff]
  %v70 = vld [vmem:[%s2 + $0x40] sm:$0xff]
  %v71 = vld [vmem:[%s2 + $0x48] sm:$0xff]
  %v72 = vld [vmem:[%s2 + $0x50] sm:$0xff]
  %v73 = vld [vmem:[%s2 + $0x58] sm:$0xff]
  %v74 = vld [vmem:[%s2 + $0x60] sm:$0xff]
  %v75 = vld [vmem:[%s2 + $0x68] sm:$0xff]
  %v76 = vld [vmem:[%s2 + $0x70] sm:$0xff]
  %v77 = vld [vmem:[%s2 + $0x78] sm:$0xff]
  %v94 = vunpack.c.l.b16 %v62
  %v95 = vunpack.c.h.b16 %v62
  %v96 = vunpack.c.l.b16 %v63
  %v97 = vunpack.c.h.b16 %v63
  %v98 = vunpack.c.l.b16 %v64
  %v99 = vunpack.c.h.b16 %v64
  %v100 = vunpack.c.l.b16 %v65
  %v101 = vunpack.c.h.b16 %v65
  %v102 = vunpack.c.l.b16 %v66
  %v103 = vunpack.c.h.b16 %v66
  %v104 = vunpack.c.l.b16 %v67
  %v105 = vunpack.c.h.b16 %v67
  %v106 = vunpack.c.l.b16 %v68
  %v107 = vunpack.c.h.b16 %v68
  %v108 = vunpack.c.l.b16 %v69
  %v109 = vunpack.c.h.b16 %v69
  %v110 = vunpack.c.l.b16 %v70
  %v111 = vunpack.c.h.b16 %v70
  %v112 = vunpack.c.l.b16 %v71
  %v113 = vunpack.c.h.b16 %v71
  %v114 = vunpack.c.l.b16 %v72
  %v115 = vunpack.c.h.b16 %v72
  %v116 = vunpack.c.l.b16 %v73
  %v117 = vunpack.c.h.b16 %v73
  %v118 = vunpack.c.l.b16 %v74
  %v119 = vunpack.c.h.b16 %v74
  %v120 = vunpack.c.l.b16 %v75
  %v121 = vunpack.c.h.b16 %v75
  %v122 = vunpack.c.l.b16 %v76
  %v123 = vunpack.c.h.b16 %v76
  %v124 = vunpack.c.l.b16 %v77
  %v125 = vunpack.c.h.b16 %v77
  %v126 = vpack.c.b16 %v96, %v94
  %v127 = vpack.c.b16 %v97, %v95
  %v128 = vpack.c.b16 %v100, %v98
  %v129 = vpack.c.b16 %v101, %v99
  %v130 = vpack.c.b16 %v104, %v102
  %v131 = vpack.c.b16 %v105, %v103
  %v132 = vpack.c.b16 %v108, %v106
  %v133 = vpack.c.b16 %v109, %v107
  %v134 = vpack.c.b16 %v112, %v110
  %v135 = vpack.c.b16 %v113, %v111
  %v136 = vpack.c.b16 %v116, %v114
  %v137 = vpack.c.b16 %v117, %v115
  %v138 = vpack.c.b16 %v120, %v118
  %v139 = vpack.c.b16 %v121, %v119
  %v140 = vpack.c.b16 %v124, %v122
  %v141 = vpack.c.b16 %v125, %v123
  %158 = vmatpush.bf16.msra.mxu0 %v140
  %159 = vmatpush.bf16.msra.mxu0 %v138
  %160 = vmatpush.bf16.msra.mxu0 %v136
  %161 = vmatpush.bf16.msra.mxu0 %v134
  %162 = vmatpush.bf16.msra.mxu0 %v132
  %163 = vmatpush.bf16.msra.mxu0 %v130
  %164 = vmatpush.bf16.msra.mxu0 %v128
  %165 = vmatpush.bf16.msra.mxu0 %v126
  %166 = vmatmul.bf16.gmra.mxu0 %v61
  %v167 = vpop.f32.mrf.mxu0
  %v168 = vadd.f32 0.0, %v167
  %v169 = vpop.f32.mrf.mxu0
  %v170 = vadd.f32 0.0, %v169
  %171 = vdwg.mxu0
  %172 = vmatpush.bf16.msra.mxu0 %v141
  %173 = vmatpush.bf16.msra.mxu0 %v139
  %174 = vmatpush.bf16.msra.mxu0 %v137
  %175 = vmatpush.bf16.msra.mxu0 %v135
  %176 = vmatpush.bf16.msra.mxu0 %v133
  %177 = vmatpush.bf16.msra.mxu0 %v131
  %178 = vmatpush.bf16.msra.mxu0 %v129
  %179 = vmatpush.bf16.msra.mxu0 %v127
  %180 = vmatmul.bf16.gmra.mxu0 %v61
  %v181 = vpop.f32.mrf.mxu0
  %v182 = vadd.f32 0.0, %v181
  %v183 = vpop.f32.mrf.mxu0
  %v184 = vadd.f32 0.0, %v183
  %185 = vdwg.mxu0
  %186 = vst [vmem:[%s3] sm:$0xff] %v168
  %187 = vst [vmem:[%s3 + $0x8] sm:$0xff] %v182
  %188 = vst [vmem:[%s3 + $0x10] sm:$0xff] %v170
  %189 = vst [vmem:[%s3 + $0x18] sm:$0xff] %v184
  // Predicated region
  $region14: #{transformer_forward.9} parent=0 // pred_check
    _
  $region15: #{transformer_forward.9} parent=0 // pred_check_branch
    %191 = sbr.rel (0) target = $region17
  $region16: #{transformer_forward.9} parent=0 // pred_region
    _
  $region17: #{transformer_forward.9} parent=0 // pred_fallthru
    _
  // Predicated region
  $region18: #{transformer_forward.9} parent=0 // pred_check
    _
  $region19: #{transformer_forward.9} parent=0 // pred_check_branch
    %193 = sbr.rel (0) target = $region21
  $region20: #{transformer_forward.9} parent=0 // pred_region
    _
  $region21: #{transformer_forward.9} parent=0 // pred_fallthru
    _

// kernel: transformer_forward.11
$region0: #{transformer_forward.11}
  #allocation0 [shape = 'u32[]', space=smem, size = 0x4, offset = 0x4, fixed_abs, tag = 'smem constant byte address 0x4 - core index']
  #allocation1 [shape = 'u32[72,128]{1,0:T(1,128)}', space=vmem, size = 0x9000, scoped, tag = 'internal scratch']
  #allocation2 [shape = 'f32[16,128]{1,0:T(8,128)}', space=vmem, size = 0x2000, scoped, tag = 'scratch operand']
  %s0 = inlined_call_operand.vmem [shape: f32[16,128], index: 0, kind: input, shape index: {}]
  %s1 = inlined_call_operand.vmem [shape: bf16[128,128], index: 1, kind: input, shape index: {}]
  %s2 = inlined_call_operand.vmem [shape: f32[16,128], index: 2, kind: input, shape index: {}]
  %s3 = inlined_call_operand.vmem [shape: f32[16,128], index: 3, kind: output, shape index: {}]
  %s4 = sld [smem:[#allocation0]]
  $region30: #{transformer_forward.11} parent=0
    _
  %s6 = ssub.s32 1, %s4
  %s7 = scalar_select 0, %s6, %s4
  // Predicated region
  $region2: #{transformer_forward.11} parent=0 // pred_check
    _
  $region3: #{transformer_forward.11} parent=0 // pred_check_branch
    %9 = sbr.rel (0) target = $region5
  $region4: #{transformer_forward.11} parent=0 // pred_region
    _
  $region5: #{transformer_forward.11} parent=0 // pred_fallthru
    _
  // Predicated region
  $region6: #{transformer_forward.11} parent=0 // pred_check
    _
  $region7: #{transformer_forward.11} parent=0 // pred_check_branch
    %11 = sbr.rel (0) target = $region9
  $region8: #{transformer_forward.11} parent=0 // pred_region
    _
  $region9: #{transformer_forward.11} parent=0 // pred_fallthru
    _
  // Predicated region
  $region10: #{transformer_forward.11} parent=0 // pred_check
    _
  $region11: #{transformer_forward.11} parent=0 // pred_check_branch
    %13 = sbr.rel (0) target = $region13
  $region12: #{transformer_forward.11} parent=0 // pred_region
    _
  $region13: #{transformer_forward.11} parent=0 // pred_fallthru
    _
  %p14 = scmp.eq.s32.totalorder 0, 0
  // Predicated region
  $region14: #{transformer_forward.11} parent=0 // pred_check
    %p15 = pneg %p14
  $region15: #{transformer_forward.11} parent=0 // pred_check_branch
    %17 = sbr.rel (%p15) target = $region17
  $region16: #{transformer_forward.11} parent=0 // pred_region
    %18 = vst [vmem:[#allocation2] sm:$0xff] 0.0
    %19 = vst [vmem:[#allocation2 + $0x8] sm:$0xff] 0.0
  $region17: #{transformer_forward.11} parent=0 // pred_fallthru
    _
  %v20 = vld [vmem:[#allocation2] sm:$0xff]
  %v21 = vld [vmem:[#allocation2 + $0x8] sm:$0xff]
  %v22 = vld [vmem:[%s0] sm:$0xff]
  %v23 = vld [vmem:[%s0 + $0x8] sm:$0xff]
  %v24 = vpack.c.bf16 %v23, %v22
  %v25 = vld [vmem:[%s1] sm:$0xf]
  %v26 = vld [vmem:[%s1 + $0x4] sm:$0xf]
  %v27 = vld [vmem:[%s1 + $0x8] sm:$0xf]
  %v28 = vld [vmem:[%s1 + $0xc] sm:$0xf]
  %v29 = vld [vmem:[%s1 + $0x10] sm:$0xf]
  %v30 = vld [vmem:[%s1 + $0x14] sm:$0xf]
  %v31 = vld [vmem:[%s1 + $0x18] sm:$0xf]
  %v32 = vld [vmem:[%s1 + $0x1c] sm:$0xf]
  %v33 = vld [vmem:[%s1 + $0x20] sm:$0xf]
  %v34 = vld [vmem:[%s1 + $0x24] sm:$0xf]
  %v35 = vld [vmem:[%s1 + $0x28] sm:$0xf]
  %v36 = vld [vmem:[%s1 + $0x2c] sm:$0xf]
  %v37 = vld [vmem:[%s1 + $0x30] sm:$0xf]
  %v38 = vld [vmem:[%s1 + $0x34] sm:$0xf]
  %v39 = vld [vmem:[%s1 + $0x38] sm:$0xf]
  %v40 = vld [vmem:[%s1 + $0x3c] sm:$0xf]
  %v57 = vunpack.c.l.b16 %v25
  %v58 = vunpack.c.l.b16 %v26
  %v59 = vunpack.c.l.b16 %v27
  %v60 = vunpack.c.l.b16 %v28
  %v61 = vunpack.c.l.b16 %v29
  %v62 = vunpack.c.l.b16 %v30
  %v63 = vunpack.c.l.b16 %v31
  %v64 = vunpack.c.l.b16 %v32
  %v65 = vunpack.c.l.b16 %v33
  %v66 = vunpack.c.l.b16 %v34
  %v67 = vunpack.c.l.b16 %v35
  %v68 = vunpack.c.l.b16 %v36
  %v69 = vunpack.c.l.b16 %v37
  %v70 = vunpack.c.l.b16 %v38
  %v71 = vunpack.c.l.b16 %v39
  %v72 = vunpack.c.l.b16 %v40
  %v73 = vpack.c.b16 %v58, %v57
  %v74 = vpack.c.b16 %v60, %v59
  %v75 = vpack.c.b16 %v62, %v61
  %v76 = vpack.c.b16 %v64, %v63
  %v77 = vpack.c.b16 %v66, %v65
  %v78 = vpack.c.b16 %v68, %v67
  %v79 = vpack.c.b16 %v70, %v69
  %v80 = vpack.c.b16 %v72, %v71
  %89 = vmatpush.bf16.msra.mxu0 %v80
  %90 = vmatpush.bf16.msra.mxu0 %v79
  %91 = vmatpush.bf16.msra.mxu0 %v78
  %92 = vmatpush.bf16.msra.mxu0 %v77
  %93 = vmatpush.bf16.msra.mxu0 %v76
  %94 = vmatpush.bf16.msra.mxu0 %v75
  %95 = vmatpush.bf16.msra.mxu0 %v74
  %96 = vmatpush.bf16.msra.mxu0 %v73
  %97 = vmatmul.bf16.gmra.mxu0 %v24
  %v98 = vpop.f32.mrf.mxu0
  %v99 = vadd.f32 0.0, %v98
  %v100 = vpop.f32.mrf.mxu0
  %v101 = vadd.f32 0.0, %v100
  %102 = vdwg.mxu0
  %v103 = vadd.f32 %v20, %v99
  %v104 = vadd.f32 %v21, %v101
  %105 = vst [vmem:[#allocation2] sm:$0xff] %v103
  %106 = vst [vmem:[#allocation2 + $0x8] sm:$0xff] %v104
  // Predicated region
  $region18: #{transformer_forward.11} parent=0 // pred_check
    %p107 = pneg %p14
  $region19: #{transformer_forward.11} parent=0 // pred_check_branch
    %109 = sbr.rel (%p107) target = $region21
  $region20: #{transformer_forward.11} parent=0 // pred_region
    %v110 = vld [vmem:[#allocation2] sm:$0xff]
    %v111 = vld [vmem:[#allocation2 + $0x8] sm:$0xff]
    %v112 = vld [vmem:[%s2] sm:$0xff]
    %v113 = vld [vmem:[%s2 + $0x8] sm:$0xff]
    %v114 = vadd.f32 %v110, %v112
    %v115 = vadd.f32 %v111, %v113
    %116 = vst [vmem:[%s3] sm:$0xff] %v114
    %117 = vst [vmem:[%s3 + $0x8] sm:$0xff] %v115
  $region21: #{transformer_forward.11} parent=0 // pred_fallthru
    _
  // Predicated region
  $region22: #{transformer_forward.11} parent=0 // pred_check
    _
  $region23: #{transformer_forward.11} parent=0 // pred_check_branch
    %119 = sbr.rel (0) target = $region25
  $region24: #{transformer_forward.11} parent=0 // pred_region
    _
  $region25: #{transformer_forward.11} parent=0 // pred_fallthru
    _
  // Predicated region
  $region26: #{transformer_forward.11} parent=0 // pred_check
    _
  $region27: #{transformer_forward.11} parent=0 // pred_check_branch
    %121 = sbr.rel (0) target = $region29
  $region28: #{transformer_forward.11} parent=0 // pred_region
    _
  $region29: #{transformer_forward.11} parent=0 // pred_fallthru
    _

// kernel: transformer_forward.10
$region0: #{transformer_forward.10}
  #allocation0 [shape = 'u32[]', space=smem, size = 0x4, offset = 0x4, fixed_abs, tag = 'smem constant byte address 0x4 - core index']
  #allocation1 [shape = 'u32[72,128]{1,0:T(1,128)}', space=vmem, size = 0x9000, scoped, tag = 'internal scratch']
  %s0 = inlined_call_operand.vmem [shape: f32[4,2,8,32], index: 0, kind: input, shape index: {}]
  %s1 = inlined_call_operand.vmem [shape: f32[4,8,32], index: 1, kind: input, shape index: {}]
  %s2 = inlined_call_operand.vmem [shape: f32[4,8,32], index: 2, kind: input, shape index: {}]
  %s3 = inlined_call_operand.vmem [shape: f32[4,2,8,32], index: 3, kind: output, shape index: {}]
  %s4 = sld [smem:[#allocation0]]
  $region45: #{transformer_forward.10} parent=0
    _
  %s6 = ssub.s32 1, %s4
  %s7 = scalar_select 0, %s6, %s4
  loop: start=0, step=1, limit=6
  $region2: #{transformer_forward.10} parent=0 // loop_pre_header
    _
  $region3: #{transformer_forward.10} parent=0 // loop_header
    %s9 = sphi 0, %s13
    %p10 = scmp.ge.s32.totalorder %s9, 6
    %s19 = sphi 0, %s21
    %s22 = sphi 0, %s19
    %s23 = sphi 0, %s22
    %s39 = sphi 0, %s23
    %s45 = sphi 0, %s47
    %s48 = sphi 0, %s45
    %s49 = sphi 0, %s48
    %s65 = sphi 0, %s49
    %s71 = sphi 0, %s73
    %s74 = sphi 0, %s71
    %s75 = sphi 0, %s74
    %s91 = sphi 0, %s75
    %s97 = sphi 0, %s99
    %s100 = sphi 0, %s97
    %s101 = sphi 0, %s100
    %s117 = sphi 0, %s101
  $region4: #{transformer_forward.10} parent=0 // loop_header_branch
    %12 = sbr.rel (%p10) target = $region8
  $region5: #{transformer_forward.10} parent=0 // loop_body
    %s14 = ssub.s32 %s9, 1
    %s15 = ssub.s32 %s9, 2
    %s16 = sadd.s32 %s9, 1
    %s17 = ssub.s32 %s9, %s16
    %p18 = scmp.eq.s32.totalorder %s17, 0
    %s20 = sadd.s32 %s19, 1
    %s21 = scalar_select %p18, %s19, %s20
    %p24 = pneg %p18
    %p25 = scmp.eq.s32.totalorder %s9, 3
    %p26 = por %p24, %p25
    %p27 = scmp.ne.s32.totalorder %s19, %s22
    %p28 = scmp.eq.s32.totalorder %s9, 0
    %p29 = por %p27, %p28
    %p30 = scmp.ne.s32.totalorder %s19, %s22
    %p31 = scmp.eq.s32.totalorder %s14, 3
    %p32 = por %p30, %p31
    %p33 = scmp.ne.s32.totalorder %s22, %s23
    %p34 = scmp.eq.s32.totalorder %s14, 0
    %p35 = por %p33, %p34
    %p36 = scmp.ne.s32.totalorder %s22, %s23
    %p37 = scmp.eq.s32.totalorder %s15, 3
    %p38 = por %p36, %p37
    %p40 = scmp.ne.s32.totalorder %s23, %s39
    %p41 = scmp.eq.s32.totalorder %s15, 0
    %p42 = por %p40, %p41
    %s43 = ssub.s32 %s9, %s16
    %p44 = scmp.eq.s32.totalorder %s43, 0
    %s46 = sadd.s32 %s45, 1
    %s47 = scalar_select %p44, %s45, %s46
    %p50 = pneg %p44
    %p51 = scmp.eq.s32.totalorder %s9, 3
    %p52 = por %p50, %p51
    %p53 = scmp.ne.s32.totalorder %s45, %s48
    %p54 = scmp.eq.s32.totalorder %s9, 0
    %p55 = por %p53, %p54
    %p56 = scmp.ne.s32.totalorder %s45, %s48
    %p57 = scmp.eq.s32.totalorder %s14, 3
    %p58 = por %p56, %p57
    %p59 = scmp.ne.s32.totalorder %s48, %s49
    %p60 = scmp.eq.s32.totalorder %s14, 0
    %p61 = por %p59, %p60
    %p62 = scmp.ne.s32.totalorder %s48, %s49
    %p63 = scmp.eq.s32.totalorder %s15, 3
    %p64 = por %p62, %p63
    %p66 = scmp.ne.s32.totalorder %s49, %s65
    %p67 = scmp.eq.s32.totalorder %s15, 0
    %p68 = por %p66, %p67
    %s69 = ssub.s32 %s9, %s16
    %p70 = scmp.eq.s32.totalorder %s69, 0
    %s72 = sadd.s32 %s71, 1
    %s73 = scalar_select %p70, %s71, %s72
    %p76 = pneg %p70
    %p77 = scmp.eq.s32.totalorder %s9, 3
    %p78 = por %p76, %p77
    %p79 = scmp.ne.s32.totalorder %s71, %s74
    %p80 = scmp.eq.s32.totalorder %s9, 0
    %p81 = por %p79, %p80
    %p82 = scmp.ne.s32.totalorder %s71, %s74
    %p83 = scmp.eq.s32.totalorder %s14, 3
    %p84 = por %p82, %p83
    %p85 = scmp.ne.s32.totalorder %s74, %s75
    %p86 = scmp.eq.s32.totalorder %s14, 0
    %p87 = por %p85, %p86
    %p88 = scmp.ne.s32.totalorder %s74, %s75
    %p89 = scmp.eq.s32.totalorder %s15, 3
    %p90 = por %p88, %p89
    %p92 = scmp.ne.s32.totalorder %s75, %s91
    %p93 = scmp.eq.s32.totalorder %s15, 0
    %p94 = por %p92, %p93
    %s95 = ssub.s32 %s9, %s16
    %p96 = scmp.eq.s32.totalorder %s95, 0
    %s98 = sadd.s32 %s97, 1
    %s99 = scalar_select %p96, %s97, %s98
    %p102 = pneg %p96
    %p103 = scmp.eq.s32.totalorder %s9, 3
    %p104 = por %p102, %p103
    %p105 = scmp.ne.s32.totalorder %s97, %s100
    %p106 = scmp.eq.s32.totalorder %s9, 0
    %p107 = por %p105, %p106
    %p108 = scmp.ne.s32.totalorder %s97, %s100
    %p109 = scmp.eq.s32.totalorder %s14, 3
    %p110 = por %p108, %p109
    %p111 = scmp.ne.s32.totalorder %s100, %s101
    %p112 = scmp.eq.s32.totalorder %s14, 0
    %p113 = por %p111, %p112
    %p114 = scmp.ne.s32.totalorder %s100, %s101
    %p115 = scmp.eq.s32.totalorder %s15, 3
    %p116 = por %p114, %p115
    %p118 = scmp.ne.s32.totalorder %s101, %s117
    %p119 = scmp.eq.s32.totalorder %s15, 0
    %p120 = por %p118, %p119
    %p121 = scmp.le.s32.totalorder 1, %s9
    %p122 = scmp.lt.s32.totalorder %s9, 5
    %p123 = pnand %p121, %p122
    %p124 = pneg %p123
    // Predicated region
    $region9: #{transformer_forward.10} parent=5 // pred_check
      _
    $region10: #{transformer_forward.10} parent=5 // pred_check_branch
      %126 = sbr.rel (%p123) target = $region12
    $region11: #{transformer_forward.10} parent=5 // pred_region
      %s127 = ssub.s32 %s9, 1
    $region12: #{transformer_forward.10} parent=5 // pred_fallthru
      _
    %p128 = scmp.lt.s32.totalorder %s9, 4
    // Predicated region
    $region13: #{transformer_forward.10} parent=5 // pred_check
      %p129 = pneg %p128
    $region14: #{transformer_forward.10} parent=5 // pred_check_branch
      %131 = sbr.rel (%p129) target = $region16
    $region15: #{transformer_forward.10} parent=5 // pred_region
      // Predicated region
      $region17: #{transformer_forward.10} parent=15 // pred_check
        %p132 = pneg %p29
      $region18: #{transformer_forward.10} parent=15 // pred_check_branch
        %134 = sbr.rel (%p132) target = $region20
      $region19: #{transformer_forward.10} parent=15 // pred_region
        %p135 = scmp.lt.s32.totalorder %s9, 3
        %s136 = scalar_select %p135, %s9, 3
        %s137 = smul.addr %s136, 2
        %s138 = smul.addr %s137, 8
        %s139 = scalar_lea.vmem %s0, %s138
      $region20: #{transformer_forward.10} parent=15 // pred_fallthru
        _
      // Predicated region
      $region21: #{transformer_forward.10} parent=15 // pred_check
        %p140 = pneg %p55
      $region22: #{transformer_forward.10} parent=15 // pred_check_branch
        %142 = sbr.rel (%p140) target = $region24
      $region23: #{transformer_forward.10} parent=15 // pred_region
        %p143 = scmp.lt.s32.totalorder %s9, 3
        %s144 = scalar_select %p143, %s9, 3
        %s145 = smul.addr %s144, 8
        %s146 = scalar_lea.vmem %s1, %s145
      $region24: #{transformer_forward.10} parent=15 // pred_fallthru
        _
      // Predicated region
      $region25: #{transformer_forward.10} parent=15 // pred_check
        %p147 = pneg %p81
      $region26: #{transformer_forward.10} parent=15 // pred_check_branch
        %149 = sbr.rel (%p147) target = $region28
      $region27: #{transformer_forward.10} parent=15 // pred_region
        %p150 = scmp.lt.s32.totalorder %s9, 3
        %s151 = scalar_select %p150, %s9, 3
        %s152 = smul.addr %s151, 8
        %s153 = scalar_lea.vmem %s2, %s152
      $region28: #{transformer_forward.10} parent=15 // pred_fallthru
        _
    $region16: #{transformer_forward.10} parent=5 // pred_fallthru
      _
    %p154 = scmp.le.s32.totalorder 1, %s9
    %p155 = scmp.lt.s32.totalorder %s9, 5
    %p156 = pnand %p154, %p155
    %p157 = pneg %p156
    // Predicated region
    $region29: #{transformer_forward.10} parent=5 // pred_check
      _
    $region30: #{transformer_forward.10} parent=5 // pred_check_branch
      %159 = sbr.rel (%p156) target = $region32
    $region31: #{transformer_forward.10} parent=5 // pred_region
      %s160 = ssub.s32 %s9, 1
      %p161 = scmp.lt.s32.totalorder %s14, 3
      %s162 = scalar_select %p161, %s14, 3
      %s163 = smul.addr %s162, 2
      %s164 = smul.addr %s163, 8
      %s165 = scalar_lea.vmem %s0, %s164
      %p166 = pneg %p35
      %p167 = pneg %p32
      %p168 = scmp.lt.s32.totalorder %s14, 3
      %s169 = scalar_select %p168, %s14, 3
      %s170 = smul.addr %s169, 8
      %s171 = scalar_lea.vmem %s1, %s170
      %p172 = pneg %p61
      %p173 = pneg %p58
      %p174 = scmp.lt.s32.totalorder %s14, 3
      %s175 = scalar_select %p174, %s14, 3
      %s176 = smul.addr %s175, 8
      %s177 = scalar_lea.vmem %s2, %s176
      %p178 = pneg %p87
      %p179 = pneg %p84
      %p180 = pneg %p113
      %p181 = pneg %p110
      %p182 = scmp.lt.s32.totalorder %s14, 3
      %s183 = scalar_select %p182, %s14, 3
      %s184 = smul.addr %s183, 2
      %s185 = smul.addr %s184, 8
      %s186 = scalar_lea.vmem %s3, %s185
      %p187 = scmp.lt.s32.totalorder %s14, 3
      %s188 = scalar_select %p187, %s14, 3
      %s189 = smul.addr %s188, 2
      %s190 = smul.addr %s189, 8
      %s191 = scalar_lea.vmem %s0, %s190
      %p192 = scmp.lt.s32.totalorder %s14, 3
      %s193 = scalar_select %p192, %s14, 3
      %s194 = smul.addr %s193, 8
      %s195 = scalar_lea.vmem %s1, %s194
      %p196 = scmp.lt.s32.totalorder %s14, 3
      %s197 = scalar_select %p196, %s14, 3
      %s198 = smul.addr %s197, 8
      %s199 = scalar_lea.vmem %s2, %s198
      %p200 = scmp.lt.s32.totalorder %s14, 3
      %s201 = scalar_select %p200, %s14, 3
      %s202 = smul.addr %s201, 2
      %s203 = smul.addr %s202, 8
      %s204 = scalar_lea.vmem %s3, %s203
      %v206 = vld [vmem:[%s191] sm:$0xff]
      %v207 = vld [vmem:[%s191 + $0x8] sm:$0xff]
      %v208 = vld [vmem:[%s195] sm:$0xff]
      %v209 = vld [vmem:[%s199] sm:$0xff]
      %v210 = vpack.c.bf16 %v207, %v206
      %v211 = vpack.c.bf16 %v208, %v208
      %vm212 = vcmask 261120
      %v214 = vsel %vm212, %v210, 0
      %v217 = vsel %vm212, %v211, 0
      %219 = vmatpush.bf16.xpose.msra.mxu0 0
      %220 = vmatpush.bf16.xpose.msra.mxu0 0
      %221 = vmatpush.bf16.xpose.msra.mxu0 0
      %222 = vmatpush.bf16.xpose.msra.mxu0 0
      %223 = vmatpush.bf16.xpose.msra.mxu0 0
      %224 = vmatpush.bf16.xpose.msra.mxu0 0
      %225 = vmatpush.bf16.xpose.msra.mxu0 0
      %226 = vmatpush.bf16.xpose.msra.mxu0 %v217
      %227 = vmatmul.bf16.gmra.mxu0 %v214
      %v228 = vpop.f32.mrf.mxu0
      %v229 = vadd.f32 0.0, %v228
      %v230 = vpop.f32.mrf.mxu0
      %v231 = vadd.f32 0.0, %v230
      %232 = vdwg.mxu0
      %v233 = vmul.f32 %v229, 0.17677669
      %v234 = vmul.f32 %v231, 0.17677669
      %v235 = vlaneseq
      %v236 = vshrl.u32 %v235, 7
      %v237 = vadd.s32 %v236, 8
      %vm238 = vcmp.lt.s32.totalorder %v236, 0
      %v239 = vsub.s32 0, %v236
      %v240 = vsel %vm238, %v239, %v236
      %v241 = vshrl.u32 %v240, 3
      %v242 = vand.u32 %v240, 7
      %v243 = vsub.s32 0, %v242
      %v244 = vsel %vm238, %v243, %v242
      %vm245 = vcmp.lt.s32.totalorder %v237, 0
      %v246 = vsub.s32 0, %v237
      %v247 = vsel %vm245, %v246, %v237
      %v248 = vshrl.u32 %v247, 3
      %v249 = vand.u32 %v247, 7
      %v250 = vsub.s32 0, %v249
      %v251 = vsel %vm245, %v250, %v249
      %vm252 = vcmp.ne.s32.totalorder %v244, 0
      %vm253 = vcmp.ne.s32.totalorder %v251, 0
      %vm254 = vcmp.lt.s32.totalorder %v244, 0
      %vm255 = vcmp.lt.s32.totalorder %v251, 0
      %vm256 = vmand %vm254, %vm252
      %vm257 = vmand %vm255, %vm253
      %v258 = vadd.s32 %v244, 8
      %v259 = vadd.s32 %v251, 8
      %v260 = vsel %vm256, %v258, %v244
      %v261 = vsel %vm257, %v259, %v251
      %v262 = vlaneseq
      %v263 = vand.u32 %v262, 127
      %vm264 = vcmp.gt.s32.totalorder %v263, %v260
      %vm265 = vcmp.gt.s32.totalorder %v263, %v261
      %v266 = vsel %vm264, -1e+30, %v233
      %v267 = vsel %vm265, -1e+30, %v234
      %vm268 = vcmask 64512
      %v269 = vsel %vm268, %v266, -inf
      %270 = vmax.xlane.f32.xlu0 %v269
      %v271 = vpop.xlane.xlu0 %270
      %v272 = vsel %vm268, %v267, -inf
      %273 = vmax.xlane.f32.xlu0 %v272
      %v274 = vpop.xlane.xlu0 %273
      %v275 = vsub.f32 %v266, %v271
      %v276 = vsub.f32 %v267, %v274
      %v277 = vmul.f32 %v275, 1.442695
      %v278 = vpow.pop %v277
      %v279 = vmul.f32 %v276, 1.442695
      %v280 = vpow.pop %v279
      %v281 = vsel %vm268, %v278, 0.0
      %282 = vadd.xlane.f32.xlu0 %v281
      %v283 = vpop.xlane.xlu0 %282
      %v284 = vsel %vm268, %v280, 0.0
      %285 = vadd.xlane.f32.xlu0 %v284
      %v286 = vpop.xlane.xlu0 %285
      %v287 = vrcp.pop %v283
      %v288 = vrcp.pop %v286
      %v289 = vmul.f32 %v278, %v287
      %v290 = vmul.f32 %v280, %v288
      %v291 = vpack.c.bf16 %v290, %v289
      %v292 = vpack.c.bf16 %v209, %v209
      %v294 = vsel %vm268, %v291, 0
      %vm296 = vcmask 1043456
      %v298 = vsel %vm296, %v292, 0
      %300 = vmatpush.bf16.msra.mxu0 0
      %301 = vmatpush.bf16.msra.mxu0 0
      %302 = vmatpush.bf16.msra.mxu0 0
      %303 = vmatpush.bf16.msra.mxu0 0
      %304 = vmatpush.bf16.msra.mxu0 0
      %305 = vmatpush.bf16.msra.mxu0 0
      %306 = vmatpush.bf16.msra.mxu0 0
      %307 = vmatpush.bf16.msra.mxu0 %v298
      %308 = vmatmul.bf16.gmra.mxu0 %v294
      %v309 = vpop.f32.mrf.mxu0
      %v310 = vadd.f32 0.0, %v309
      %v311 = vpop.f32.mrf.mxu0
      %v312 = vadd.f32 0.0, %v311
      %313 = vdwg.mxu0
      %314 = vst.msk [vmem:[%s204] sm:$0xff] %vm212, %v310
      %315 = vst.msk [vmem:[%s204 + $0x8] sm:$0xff] %vm212, %v312
      %p316 = scmp.lt.s32.totalorder %s14, 3
      %s317 = scalar_select %p316, %s14, 3
      %s318 = smul.addr %s317, 2
      %s319 = smul.addr %s318, 8
      %s320 = scalar_lea.vmem %s3, %s319
      // Predicated region
      $region33: #{transformer_forward.10} parent=31 // pred_check
        %p321 = pneg %p110
      $region34: #{transformer_forward.10} parent=31 // pred_check_branch
        %323 = sbr.rel (%p321) target = $region36
      $region35: #{transformer_forward.10} parent=31 // pred_region
        _
      $region36: #{transformer_forward.10} parent=31 // pred_fallthru
        _
    $region32: #{transformer_forward.10} parent=5 // pred_fallthru
      _
    %p324 = scmp.le.s32.totalorder 2, %s9
    // Predicated region
    $region37: #{transformer_forward.10} parent=5 // pred_check
      %p325 = pneg %p324
    $region38: #{transformer_forward.10} parent=5 // pred_check_branch
      %327 = sbr.rel (%p325) target = $region40
    $region39: #{transformer_forward.10} parent=5 // pred_region
      %s328 = ssub.s32 %s9, 2
      // Predicated region
      $region41: #{transformer_forward.10} parent=39 // pred_check
        %p329 = pneg %p116
      $region42: #{transformer_forward.10} parent=39 // pred_check_branch
        %331 = sbr.rel (%p329) target = $region44
      $region43: #{transformer_forward.10} parent=39 // pred_region
        %p332 = scmp.lt.s32.totalorder %s15, 3
        %s333 = scalar_select %p332, %s15, 3
        %s334 = smul.addr %s333, 2
        %s335 = smul.addr %s334, 8
        %s336 = scalar_lea.vmem %s3, %s335
      $region44: #{transformer_forward.10} parent=39 // pred_fallthru
        _
    $region40: #{transformer_forward.10} parent=5 // pred_fallthru
      _
  $region6: #{transformer_forward.10} parent=0 // loop_footer
    %s13 = sadd.s32 1, %s9
  $region7: #{transformer_forward.10} parent=0 // loop_footer_branch
    %8 = sbr.rel target = $region3
  $region8: #{transformer_forward.10} parent=0 // loop_exit
    _

// kernel: transformer_forward.17
$region0: #{transformer_forward.17}
  #allocation0 [shape = 'u32[]', space=smem, size = 0x4, offset = 0x4, fixed_abs, tag = 'smem constant byte address 0x4 - core index']
  #allocation1 [shape = 'u32[72,128]{1,0:T(1,128)}', space=vmem, size = 0x9000, scoped, tag = 'internal scratch']
  %s0 = inlined_call_operand.vmem [shape: f32[16,128], index: 0, kind: input, shape index: {}]
  %s1 = inlined_call_operand.vmem [shape: f32[1,128], index: 1, kind: input, shape index: {}]
  %s2 = inlined_call_operand.vmem [shape: bf16[128,512], index: 2, kind: input, shape index: {}]
  %s3 = inlined_call_operand.hbm [shape: f32[16,512], index: 3, kind: output, shape index: {}]
  %s4 = sld [smem:[#allocation0]]
  $region83: #{transformer_forward.17} parent=0
    _
  %s6 = ssub.s32 1, %s4
  %s7 = scalar_select 0, %s6, %s4
  $region1: #{transformer_forward.17} parent=0
    #allocation2 [shape = 'u8[131072]{0}', space=vmem, size = 0x20000, scoped, tag = 'input window, operand 2']
    #allocation3 [shape = 'u8[32768]{0}', space=vmem, size = 0x8000, scoped, tag = 'output window, operand 0']
    #allocation4 [shape = 's32[2]{0}', space=sflag, size = 0x8, scoped, tag = 'scoped memory for transformer_forward.17']
    %8 = vsyncpa [#allocation4], 0
    %s9 = scalar_lea.sflag [#allocation4], 1
    %10 = vsyncpa %s9, 0
    loop: start=0, step=1, limit=4
    $region2: #{transformer_forward.17} parent=1 // loop_pre_header
      _
    $region3: #{transformer_forward.17} parent=1 // loop_header
      %s12 = sphi 0, %s16
      %p13 = scmp.ge.s32.totalorder %s12, 4
      %s19 = sphi 0, %s31
      %s20 = sphi 0, %s27
      %s21 = sphi 0, %s19
      %s22 = sphi 0, %s20
      %s23 = sphi 0, %s21
      %s24 = sphi 0, %s22
      %s34 = sphi 0, %s36
      %s37 = sphi 0, %s34
      %s38 = sphi 0, %s37
      %s54 = sphi 0, %s38
      %s58 = sphi 0, %s58
      %s60 = sphi 0, %s58
      %s61 = sphi 0, %s60
      %s75 = sphi 0, %s61
      %s81 = sphi 0, %s83
      %s84 = sphi 0, %s81
      %s85 = sphi 0, %s84
      %s101 = sphi 0, %s85
      %s109 = sphi 0, %s111
      %s112 = sphi 0, %s109
      %s113 = sphi 0, %s112
      %s129 = sphi 0, %s113
    $region4: #{transformer_forward.17} parent=1 // loop_header_branch
      %15 = sbr.rel (%p13) target = $region8
    $region5: #{transformer_forward.17} parent=1 // loop_body
      %s17 = ssub.s32 %s12, 1
      %s18 = ssub.s32 %s12, 2
      %s25 = sadd.s32 1, %s20
      %p26 = scmp.ge.s32.totalorder %s25, 2
      %s27 = scalar_select %p26, 0, %s25
      %s28 = sadd.s32 1, %s19
      %s29 = scalar_select %p26, %s28, %s19
      %p30 = scmp.ge.s32.totalorder %s29, 1
      %s31 = scalar_select %p30, 0, %s29
      %s32 = ssub.s32 %s19, %s31
      %p33 = scmp.eq.s32.totalorder %s32, 0
      %s35 = sadd.s32 %s34, 1
      %s36 = scalar_select %p33, %s34, %s35
      %p39 = pneg %p33
      %p40 = scmp.eq.s32.totalorder %s12, 1
      %p41 = por %p39, %p40
      %p42 = scmp.ne.s32.totalorder %s34, %s37
      %p43 = scmp.eq.s32.totalorder %s12, 0
      %p44 = por %p42, %p43
      %p45 = scmp.ne.s32.totalorder %s34, %s37
      %p46 = scmp.eq.s32.totalorder %s17, 1
      %p47 = por %p45, %p46
      %p48 = scmp.ne.s32.totalorder %s37, %s38
      %p49 = scmp.eq.s32.totalorder %s17, 0
      %p50 = por %p48, %p49
      %p51 = scmp.ne.s32.totalorder %s37, %s38
      %p52 = scmp.eq.s32.totalorder %s18, 1
      %p53 = por %p51, %p52
      %p55 = scmp.ne.s32.totalorder %s38, %s54
      %p56 = scmp.eq.s32.totalorder %s18, 0
      %p57 = por %p55, %p56
      %s59 = sadd.s32 %s58, 1
      %p62 = scmp.eq.s32.totalorder %s12, 1
      %p63 = scmp.ne.s32.totalorder %s58, %s60
      %p64 = scmp.eq.s32.totalorder %s12, 0
      %p65 = por %p63, %p64
      %p66 = scmp.ne.s32.totalorder %s58, %s60
      %p67 = scmp.eq.s32.totalorder %s17, 1
      %p68 = por %p66, %p67
      %p69 = scmp.ne.s32.totalorder %s60, %s61
      %p70 = scmp.eq.s32.totalorder %s17, 0
      %p71 = por %p69, %p70
      %p72 = scmp.ne.s32.totalorder %s60, %s61
      %p73 = scmp.eq.s32.totalorder %s18, 1
      %p74 = por %p72, %p73
      %p76 = scmp.ne.s32.totalorder %s61, %s75
      %p77 = scmp.eq.s32.totalorder %s18, 0
      %p78 = por %p76, %p77
      %s79 = ssub.s32 %s20, %s27
      %p80 = scmp.eq.s32.totalorder %s79, 0
      %s82 = sadd.s32 %s81, 1
      %s83 = scalar_select %p80, %s81, %s82
      %p86 = pneg %p80
      %p87 = scmp.eq.s32.totalorder %s12, 1
      %p88 = por %p86, %p87
      %p89 = scmp.ne.s32.totalorder %s81, %s84
      %p90 = scmp.eq.s32.totalorder %s12, 0
      %p91 = por %p89, %p90
      %p92 = scmp.ne.s32.totalorder %s81, %s84
      %p93 = scmp.eq.s32.totalorder %s17, 1
      %p94 = por %p92, %p93
      %p95 = scmp.ne.s32.totalorder %s84, %s85
      %p96 = scmp.eq.s32.totalorder %s17, 0
      %p97 = por %p95, %p96
      %p98 = scmp.ne.s32.totalorder %s84, %s85
      %p99 = scmp.eq.s32.totalorder %s18, 1
      %p100 = por %p98, %p99
      %p102 = scmp.ne.s32.totalorder %s85, %s101
      %p103 = scmp.eq.s32.totalorder %s18, 0
      %p104 = por %p102, %p103
      %s105 = ssub.s32 %s19, %s31
      %s106 = ssub.s32 %s20, %s27
      %s107 = sor.u32 %s105, %s106
      %p108 = scmp.eq.s32.totalorder %s107, 0
      %s110 = sadd.s32 %s109, 1
      %s111 = scalar_select %p108, %s109, %s110
      %p114 = pneg %p108
      %p115 = scmp.eq.s32.totalorder %s12, 1
      %p116 = por %p114, %p115
      %p117 = scmp.ne.s32.totalorder %s109, %s112
      %p118 = scmp.eq.s32.totalorder %s12, 0
      %p119 = por %p117, %p118
      %p120 = scmp.ne.s32.totalorder %s109, %s112
      %p121 = scmp.eq.s32.totalorder %s17, 1
      %p122 = por %p120, %p121
      %p123 = scmp.ne.s32.totalorder %s112, %s113
      %p124 = scmp.eq.s32.totalorder %s17, 0
      %p125 = por %p123, %p124
      %p126 = scmp.ne.s32.totalorder %s112, %s113
      %p127 = scmp.eq.s32.totalorder %s18, 1
      %p128 = por %p126, %p127
      %p130 = scmp.ne.s32.totalorder %s113, %s129
      %p131 = scmp.eq.s32.totalorder %s18, 0
      %p132 = por %p130, %p131
      %p133 = scmp.le.s32.totalorder 1, %s12
      %p134 = scmp.lt.s32.totalorder %s12, 3
      %p135 = pnand %p133, %p134
      %p136 = pneg %p135
      // Predicated region
      $region9: #{transformer_forward.17} parent=5 // pred_check
        _
      $region10: #{transformer_forward.17} parent=5 // pred_check_branch
        %138 = sbr.rel (%p135) target = $region12
      $region11: #{transformer_forward.17} parent=5 // pred_region
        %s139 = ssub.s32 %s12, 1
        // Predicated region
        $region13: #{transformer_forward.17} parent=11 // pred_check
          %p140 = pneg %p50
        $region14: #{transformer_forward.17} parent=11 // pred_check_branch
          %142 = sbr.rel (%p140) target = $region16
        $region15: #{transformer_forward.17} parent=11 // pred_region
          %s143 = smul.u32 2, %s21
          %p144 = scmp.lt.s32.totalorder %s143, 1
          %s145 = scalar_select %p144, %s143, 1
          %s146 = smul.addr %s145, 8
          %s147 = scalar_lea.vmem %s0, %s146
          %s148 = smul.u32 2, %s21
        $region16: #{transformer_forward.17} parent=11 // pred_fallthru
          _
        // Predicated region
        $region17: #{transformer_forward.17} parent=11 // pred_check
          %p149 = pneg %p71
        $region18: #{transformer_forward.17} parent=11 // pred_check_branch
          %151 = sbr.rel (%p149) target = $region20
        $region19: #{transformer_forward.17} parent=11 // pred_region
          _
        $region20: #{transformer_forward.17} parent=11 // pred_fallthru
          _
      $region12: #{transformer_forward.17} parent=5 // pred_fallthru
        _
      %p152 = scmp.lt.s32.totalorder %s12, 2
      // Predicated region
      $region21: #{transformer_forward.17} parent=5 // pred_check
        %p153 = pneg %p152
      $region22: #{transformer_forward.17} parent=5 // pred_check_branch
        %155 = sbr.rel (%p153) target = $region24
      $region23: #{transformer_forward.17} parent=5 // pred_region
        // Predicated region
        $region25: #{transformer_forward.17} parent=23 // pred_check
          %p156 = pneg %p91
        $region26: #{transformer_forward.17} parent=23 // pred_check_branch
          %158 = sbr.rel (%p156) target = $region28
        $region27: #{transformer_forward.17} parent=23 // pred_region
          %s159 = sand.u32 %s81, 1
          %s160 = sand.u32 %s81, 1
          %s161 = smul.addr %s160, 128
          %s162 = scalar_lea.vmem [#allocation2], %s161
          %s163 = smul.u32 2, %s20
          %s164 = smul.addr %s163, 4
          %s165 = scalar_lea.vmem %s2, %s164
          // Predicated region
          $region29: #{transformer_forward.17} parent=27 // pred_check
            _
          $region30: #{transformer_forward.17} parent=27 // pred_check_branch
            %167 = sbr.rel (0) target = $region32
          $region31: #{transformer_forward.17} parent=27 // pred_region
            // Predicated region
            $region33: #{transformer_forward.17} parent=31 // pred_check
              _
            $region34: #{transformer_forward.17} parent=31 // pred_check_branch
              %169 = sbr.rel (0) target = $region36
            $region35: #{transformer_forward.17} parent=31 // pred_region
              // Predicated region
              $region48: #{transformer_forward.17} parent=35 // pred_check
                _
              $region49: #{transformer_forward.17} parent=35 // pred_check_branch
                %215 = sbr.rel (0) target = $region51
              $region50: #{transformer_forward.17} parent=35 // pred_region
                loop: start=0, step=1, limit=1
                $region52: #{transformer_forward.17} parent=50 // loop_pre_header
                  _
                $region53: #{transformer_forward.17} parent=50 // loop_header
                  %s217 = sphi 0, %s221
                  %p218 = scmp.ge.s32.totalorder %s217, 1
                  %s222 = sphi %s165, %s165
                  %s223 = sphi %s162, %s162
                $region54: #{transformer_forward.17} parent=50 // loop_header_branch
                  %220 = sbr.rel (%p218) target = $region58
                $region55: #{transformer_forward.17} parent=50 // loop_body
                  %v224 = vld [vmem:[%s222] sm:$0xff]
                  %225 = vst [vmem:[%s223] sm:$0xff] %v224
                  %v226 = vld [vmem:[%s222 + $0x10] sm:$0xff]
                  %227 = vst [vmem:[%s223 + $0x8] sm:$0xff] %v226
                  %v228 = vld [vmem:[%s222 + $0x20] sm:$0xff]
                  %229 = vst [vmem:[%s223 + $0x10] sm:$0xff] %v228
                  %v230 = vld [vmem:[%s222 + $0x30] sm:$0xff]
                  %231 = vst [vmem:[%s223 + $0x18] sm:$0xff] %v230
                  %v232 = vld [vmem:[%s222 + $0x40] sm:$0xff]
                  %233 = vst [vmem:[%s223 + $0x20] sm:$0xff] %v232
                  %v234 = vld [vmem:[%s222 + $0x50] sm:$0xff]
                  %235 = vst [vmem:[%s223 + $0x28] sm:$0xff] %v234
                  %v236 = vld [vmem:[%s222 + $0x60] sm:$0xff]
                  %237 = vst [vmem:[%s223 + $0x30] sm:$0xff] %v236
                  %v238 = vld [vmem:[%s222 + $0x70] sm:$0xff]
                  %239 = vst [vmem:[%s223 + $0x38] sm:$0xff] %v238
                  %v240 = vld [vmem:[%s222 + $0x80] sm:$0xff]
                  %241 = vst [vmem:[%s223 + $0x40] sm:$0xff] %v240
                  %v242 = vld [vmem:[%s222 + $0x90] sm:$0xff]
                  %243 = vst [vmem:[%s223 + $0x48] sm:$0xff] %v242
                  %v244 = vld [vmem:[%s222 + $0xa0] sm:$0xff]
                  %245 = vst [vmem:[%s223 + $0x50] sm:$0xff] %v244
                  %v246 = vld [vmem:[%s222 + $0xb0] sm:$0xff]
                  %247 = vst [vmem:[%s223 + $0x58] sm:$0xff] %v246
                  %v248 = vld [vmem:[%s222 + $0xc0] sm:$0xff]
                  %249 = vst [vmem:[%s223 + $0x60] sm:$0xff] %v248
                  %v250 = vld [vmem:[%s222 + $0xd0] sm:$0xff]
                  %251 = vst [vmem:[%s223 + $0x68] sm:$0xff] %v250
                  %v252 = vld [vmem:[%s222 + $0xe0] sm:$0xff]
                  %253 = vst [vmem:[%s223 + $0x70] sm:$0xff] %v252
                  %v254 = vld [vmem:[%s222 + $0xf0] sm:$0xff]
                  %255 = vst [vmem:[%s223 + $0x78] sm:$0xff] %v254
                $region56: #{transformer_forward.17} parent=50 // loop_footer
                  %s221 = sadd.s32 1, %s217
                $region57: #{transformer_forward.17} parent=50 // loop_footer_branch
                  %216 = sbr.rel target = $region53
                $region58: #{transformer_forward.17} parent=50 // loop_exit
                  _
              $region51: #{transformer_forward.17} parent=35 // pred_fallthru
                _
              // Predicated region
              $region59: #{transformer_forward.17} parent=35 // pred_check
                _
              $region60: #{transformer_forward.17} parent=35 // pred_check_branch
                %257 = sbr.rel target = $region62
              $region61: #{transformer_forward.17} parent=35 // pred_region
                _
              $region62: #{transformer_forward.17} parent=35 // pred_fallthru
                _
            $region36: #{transformer_forward.17} parent=31 // pred_fallthru
              _
            // Predicated region
            $region37: #{transformer_forward.17} parent=31 // pred_check
              _
            $region38: #{transformer_forward.17} parent=31 // pred_check_branch
              %171 = sbr.rel target = $region40
            $region39: #{transformer_forward.17} parent=31 // pred_region
              %s173 = ssub.s32 256, 1
              loop: start=0, step=1, limit=1
              $region41: #{transformer_forward.17} parent=39 // loop_pre_header
                _
              $region42: #{transformer_forward.17} parent=39 // loop_header
                %s175 = sphi 0, %s179
                %p176 = scmp.ge.s32.totalorder %s175, 1
                %s180 = sphi %s165, %s165
                %s181 = sphi %s162, %s162
              $region43: #{transformer_forward.17} parent=39 // loop_header_branch
                %178 = sbr.rel (%p176) target = $region47
              $region44: #{transformer_forward.17} parent=39 // loop_body
                %v182 = vld [vmem:[%s180] sm:%s173]
                %183 = vst [vmem:[%s181] sm:%s173] %v182
                %v184 = vld [vmem:[%s180 + $0x10] sm:%s173]
                %185 = vst [vmem:[%s181 + $0x8] sm:%s173] %v184
                %v186 = vld [vmem:[%s180 + $0x20] sm:%s173]
                %187 = vst [vmem:[%s181 + $0x10] sm:%s173] %v186
                %v188 = vld [vmem:[%s180 + $0x30] sm:%s173]
                %189 = vst [vmem:[%s181 + $0x18] sm:%s173] %v188
                %v190 = vld [vmem:[%s180 + $0x40] sm:%s173]
                %191 = vst [vmem:[%s181 + $0x20] sm:%s173] %v190
                %v192 = vld [vmem:[%s180 + $0x50] sm:%s173]
                %193 = vst [vmem:[%s181 + $0x28] sm:%s173] %v192
                %v194 = vld [vmem:[%s180 + $0x60] sm:%s173]
                %195 = vst [vmem:[%s181 + $0x30] sm:%s173] %v194
                %v196 = vld [vmem:[%s180 + $0x70] sm:%s173]
                %197 = vst [vmem:[%s181 + $0x38] sm:%s173] %v196
                %v198 = vld [vmem:[%s180 + $0x80] sm:%s173]
                %199 = vst [vmem:[%s181 + $0x40] sm:%s173] %v198
                %v200 = vld [vmem:[%s180 + $0x90] sm:%s173]
                %201 = vst [vmem:[%s181 + $0x48] sm:%s173] %v200
                %v202 = vld [vmem:[%s180 + $0xa0] sm:%s173]
                %203 = vst [vmem:[%s181 + $0x50] sm:%s173] %v202
                %v204 = vld [vmem:[%s180 + $0xb0] sm:%s173]
                %205 = vst [vmem:[%s181 + $0x58] sm:%s173] %v204
                %v206 = vld [vmem:[%s180 + $0xc0] sm:%s173]
                %207 = vst [vmem:[%s181 + $0x60] sm:%s173] %v206
                %v208 = vld [vmem:[%s180 + $0xd0] sm:%s173]
                %209 = vst [vmem:[%s181 + $0x68] sm:%s173] %v208
                %v210 = vld [vmem:[%s180 + $0xe0] sm:%s173]
                %211 = vst [vmem:[%s181 + $0x70] sm:%s173] %v210
                %v212 = vld [vmem:[%s180 + $0xf0] sm:%s173]
                %213 = vst [vmem:[%s181 + $0x78] sm:%s173] %v212
              $region45: #{transformer_forward.17} parent=39 // loop_footer
                %s179 = sadd.s32 1, %s175
              $region46: #{transformer_forward.17} parent=39 // loop_footer_branch
                %174 = sbr.rel target = $region42
              $region47: #{transformer_forward.17} parent=39 // loop_exit
                _
            $region40: #{transformer_forward.17} parent=31 // pred_fallthru
              _
          $region32: #{transformer_forward.17} parent=27 // pred_fallthru
            _
          %258 = vnop
        $region28: #{transformer_forward.17} parent=23 // pred_fallthru
          _
      $region24: #{transformer_forward.17} parent=5 // pred_fallthru
        _
      %p259 = scmp.le.s32.totalorder 1, %s12
      %p260 = scmp.lt.s32.totalorder %s12, 3
      %p261 = pnand %p259, %p260
      %p262 = pneg %p261
      // Predicated region
      $region63: #{transformer_forward.17} parent=5 // pred_check
        _
      $region64: #{transformer_forward.17} parent=5 // pred_check_branch
        %264 = sbr.rel (%p261) target = $region66
      $region65: #{transformer_forward.17} parent=5 // pred_region
        %s265 = ssub.s32 %s12, 1
        %s266 = sand.u32 %s84, 1
        %s267 = sand.u32 %s84, 1
        %s268 = smul.addr %s267, 128
        %s269 = scalar_lea.vmem [#allocation2], %s268
        // Predicated region
        $region67: #{transformer_forward.17} parent=65 // pred_check
          %p270 = pneg %p97
        $region68: #{transformer_forward.17} parent=65 // pred_check_branch
          %272 = sbr.rel (%p270) target = $region70
        $region69: #{transformer_forward.17} parent=65 // pred_region
          _
        $region70: #{transformer_forward.17} parent=65 // pred_fallthru
          _
        %s273 = smul.u32 2, %s21
        %p274 = scmp.lt.s32.totalorder %s273, 1
        %s275 = scalar_select %p274, %s273, 1
        %s276 = smul.addr %s275, 8
        %s277 = scalar_lea.vmem %s0, %s276
        %p278 = pneg %p50
        %p279 = pneg %p47
        %p280 = pneg %p71
        %p281 = pneg %p68
        %s282 = sand.u32 %s84, 1
        %s283 = sand.u32 %s84, 1
        %s284 = smul.addr %s283, 128
        %s285 = scalar_lea.vmem [#allocation2], %s284
        %p286 = pneg %p97
        %p287 = pneg %p94
        %p288 = pneg %p125
        %p289 = pneg %p122
        %s290 = sand.u32 %s112, 1
        %s291 = scalar_lea.sflag [#allocation4], %s290
        %s292 = sand.u32 %s112, 1
        %s293 = smul.addr %s292, 32
        %s294 = scalar_lea.vmem [#allocation3], %s293
        %s295 = smul.u32 2, %s21
        %p296 = scmp.lt.s32.totalorder %s295, 1
        %s297 = scalar_select %p296, %s295, 1
        %s298 = smul.addr %s297, 8
        %s299 = scalar_lea.vmem %s0, %s298
        %s300 = smul.u32 2, %s21
        %s301 = smul.u32 2, %s22
        %s302 = smul.u32 2, %s21
        %s303 = smul.u32 2, %s22
        %v304 = vld [vmem:[%s299] sm:$0xff]
        %v305 = vld [vmem:[%s299 + $0x8] sm:$0xff]
        %v306 = vmul.f32 %v304, %v304
        %v307 = vmul.f32 %v305, %v305
        %308 = vadd.xlane.f32.xlu0 %v306
        %v309 = vpop.xlane.xlu0 %308
        %310 = vadd.xlane.f32.xlu0 %v307
        %v311 = vpop.xlane.xlu0 %310
        %v312 = vrcp.pop 128.0
        %v313 = vmul.f32 128.0, %v312
        %v314 = vsub.f32 1.0, %v313
        %v315 = vmul.f32 %v312, %v314
        %v316 = vadd.f32 %v312, %v315
        %vm317 = vweird.f32 %v312
        %v318 = vsel %vm317, %v312, %v316
        %v319 = vmul.f32 %v309, %v318
        %v320 = vmul.f32 %v311, %v318
        %v321 = vadd.f32 %v319, 1e-05
        %v322 = vadd.f32 %v320, 1e-05
        %v323 = vrsqrt.pop %v321
        %v324 = vmul.f32 %v323, %v321
        %v325 = vmul.f32 %v324, %v323
        %v326 = vmul.f32 0.5, %v325
        %v327 = vsub.f32 1.5, %v326
        %v328 = vmul.f32 %v323, %v327
        %vm329 = vweird.f32 %v321
        %vm330 = vweird.f32 %v323
        %vm331 = vmor %vm329, %vm330
        %v332 = vsel %vm331, %v323, %v328
        %v333 = vrsqrt.pop %v322
        %v334 = vmul.f32 %v333, %v322
        %v335 = vmul.f32 %v334, %v333
        %v336 = vmul.f32 0.5, %v335
        %v337 = vsub.f32 1.5, %v336
        %v338 = vmul.f32 %v333, %v337
        %vm339 = vweird.f32 %v322
        %vm340 = vweird.f32 %v333
        %vm341 = vmor %vm339, %vm340
        %v342 = vsel %vm341, %v333, %v338
        %v343 = vmul.f32 %v304, %v332
        %v344 = vmul.f32 %v305, %v342
        %v345 = vld [vmem:[%s1] sm:$0x1]
        %v347 = vperm.slane %v345, 0
        %v349 = vmul.f32 %v343, %v347
        %v350 = vmul.f32 %v344, %v347
        %v351 = vpack.c.bf16 %v350, %v349
        %v352 = vld [vmem:[%s269] sm:$0xff]
        %v353 = vld [vmem:[%s269 + $0x8] sm:$0xff]
        %v354 = vld [vmem:[%s269 + $0x10] sm:$0xff]
        %v355 = vld [vmem:[%s269 + $0x18] sm:$0xff]
        %v356 = vld [vmem:[%s269 + $0x20] sm:$0xff]
        %v357 = vld [vmem:[%s269 + $0x28] sm:$0xff]
        %v358 = vld [vmem:[%s269 + $0x30] sm:$0xff]
        %v359 = vld [vmem:[%s269 + $0x38] sm:$0xff]
        %v360 = vld [vmem:[%s269 + $0x40] sm:$0xff]
        %v361 = vld [vmem:[%s269 + $0x48] sm:$0xff]
        %v362 = vld [vmem:[%s269 + $0x50] sm:$0xff]
        %v363 = vld [vmem:[%s269 + $0x58] sm:$0xff]
        %v364 = vld [vmem:[%s269 + $0x60] sm:$0xff]
        %v365 = vld [vmem:[%s269 + $0x68] sm:$0xff]
        %v366 = vld [vmem:[%s269 + $0x70] sm:$0xff]
        %v367 = vld [vmem:[%s269 + $0x78] sm:$0xff]
        %v384 = vunpack.c.l.b16 %v352
        %v385 = vunpack.c.h.b16 %v352
        %v386 = vunpack.c.l.b16 %v353
        %v387 = vunpack.c.h.b16 %v353
        %v388 = vunpack.c.l.b16 %v354
        %v389 = vunpack.c.h.b16 %v354
        %v390 = vunpack.c.l.b16 %v355
        %v391 = vunpack.c.h.b16 %v355
        %v392 = vunpack.c.l.b16 %v356
        %v393 = vunpack.c.h.b16 %v356
        %v394 = vunpack.c.l.b16 %v357
        %v395 = vunpack.c.h.b16 %v357
        %v396 = vunpack.c.l.b16 %v358
        %v397 = vunpack.c.h.b16 %v358
        %v398 = vunpack.c.l.b16 %v359
        %v399 = vunpack.c.h.b16 %v359
        %v400 = vunpack.c.l.b16 %v360
        %v401 = vunpack.c.h.b16 %v360
        %v402 = vunpack.c.l.b16 %v361
        %v403 = vunpack.c.h.b16 %v361
        %v404 = vunpack.c.l.b16 %v362
        %v405 = vunpack.c.h.b16 %v362
        %v406 = vunpack.c.l.b16 %v363
        %v407 = vunpack.c.h.b16 %v363
        %v408 = vunpack.c.l.b16 %v364
        %v409 = vunpack.c.h.b16 %v364
        %v410 = vunpack.c.l.b16 %v365
        %v411 = vunpack.c.h.b16 %v365
        %v412 = vunpack.c.l.b16 %v366
        %v413 = vunpack.c.h.b16 %v366
        %v414 = vunpack.c.l.b16 %v367
        %v415 = vunpack.c.h.b16 %v367
        %v416 = vpack.c.b16 %v386, %v384
        %v417 = vpack.c.b16 %v387, %v385
        %v418 = vpack.c.b16 %v390, %v388
        %v419 = vpack.c.b16 %v391, %v389
        %v420 = vpack.c.b16 %v394, %v392
        %v421 = vpack.c.b16 %v395, %v393
        %v422 = vpack.c.b16 %v398, %v396
        %v423 = vpack.c.b16 %v399, %v397
        %v424 = vpack.c.b16 %v402, %v400
        %v425 = vpack.c.b16 %v403, %v401
        %v426 = vpack.c.b16 %v406, %v404
        %v427 = vpack.c.b16 %v407, %v405
        %v428 = vpack.c.b16 %v410, %v408
        %v429 = vpack.c.b16 %v411, %v409
        %v430 = vpack.c.b16 %v414, %v412
        %v431 = vpack.c.b16 %v415, %v413
        %448 = vmatpush.bf16.msra.mxu0 %v430
        %449 = vmatpush.bf16.msra.mxu0 %v428
        %450 = vmatpush.bf16.msra.mxu0 %v426
        %451 = vmatpush.bf16.msra.mxu0 %v424
        %452 = vmatpush.bf16.msra.mxu0 %v422
        %453 = vmatpush.bf16.msra.mxu0 %v420
        %454 = vmatpush.bf16.msra.mxu0 %v418
        %455 = vmatpush.bf16.msra.mxu0 %v416
        %456 = vmatmul.bf16.gmra.mxu0 %v351
        %v457 = vpop.f32.mrf.mxu0
        %v458 = vadd.f32 0.0, %v457
        %v459 = vpop.f32.mrf.mxu0
        %v460 = vadd.f32 0.0, %v459
        %461 = vdwg.mxu0
        %462 = vmatpush.bf16.msra.mxu0 %v431
        %463 = vmatpush.bf16.msra.mxu0 %v429
        %464 = vmatpush.bf16.msra.mxu0 %v427
        %465 = vmatpush.bf16.msra.mxu0 %v425
        %466 = vmatpush.bf16.msra.mxu0 %v423
        %467 = vmatpush.bf16.msra.mxu0 %v421
        %468 = vmatpush.bf16.msra.mxu0 %v419
        %469 = vmatpush.bf16.msra.mxu0 %v417
        %470 = vmatmul.bf16.gmra.mxu0 %v351
        %v471 = vpop.f32.mrf.mxu0
        %v472 = vadd.f32 0.0, %v471
        %v473 = vpop.f32.mrf.mxu0
        %v474 = vadd.f32 0.0, %v473
        %475 = vdwg.mxu0
        %476 = vst [vmem:[%s294] sm:$0xff] %v458
        %477 = vst [vmem:[%s294 + $0x8] sm:$0xff] %v472
        %478 = vst [vmem:[%s294 + $0x10] sm:$0xff] %v460
        %479 = vst [vmem:[%s294 + $0x18] sm:$0xff] %v474
        %s480 = sand.u32 %s112, 1
        %s481 = scalar_lea.sflag [#allocation4], %s480
        %s482 = sand.u32 %s112, 1
        %s483 = smul.addr %s482, 32
        %s484 = scalar_lea.vmem [#allocation3], %s483
        // Predicated region
        $region71: #{transformer_forward.17} parent=65 // pred_check
          %p485 = pneg %p122
        $region72: #{transformer_forward.17} parent=65 // pred_check_branch
          %487 = sbr.rel (%p485) target = $region74
        $region73: #{transformer_forward.17} parent=65 // pred_region
          %s488 = smul.u32 2, %s21
          %s489 = smul.u32 2, %s22
          %491 = vsyncadd %s481, 0
          %s492 = smul.addr %s488, 4
          %s493 = sadd.s32 %s489, %s492
          %s494 = smul.addr %s493, 8
          %s495 = scalar_lea.hbm %s3, %s494
          %s496 = sshll.u32 %s484, 4
          %s497 = int_to_ptr.vmem [resolvable:$true] %s496
          %s498 = sshll.u32 %s495, 4
          %s499 = int_to_ptr.hbm [resolvable:$true] %s498
          %504 = dma.vmem_to_hbm [thread:$0]  %s497, 512, %s499, %s481, 256, 512, 16
        $region74: #{transformer_forward.17} parent=65 // pred_fallthru
          _
      $region66: #{transformer_forward.17} parent=5 // pred_fallthru
        _
      %p505 = scmp.le.s32.totalorder 2, %s12
      // Predicated region
      $region75: #{transformer_forward.17} parent=5 // pred_check
        %p506 = pneg %p505
      $region76: #{transformer_forward.17} parent=5 // pred_check_branch
        %508 = sbr.rel (%p506) target = $region78
      $region77: #{transformer_forward.17} parent=5 // pred_region
        %s509 = ssub.s32 %s12, 2
        // Predicated region
        $region79: #{transformer_forward.17} parent=77 // pred_check
          %p510 = pneg %p128
        $region80: #{transformer_forward.17} parent=77 // pred_check_branch
          %512 = sbr.rel (%p510) target = $region82
        $region81: #{transformer_forward.17} parent=77 // pred_region
          %s513 = sand.u32 %s113, 1
          %s514 = scalar_lea.sflag [#allocation4], %s513
          %s515 = sand.u32 %s113, 1
          %s516 = smul.addr %s515, 32
          %s517 = scalar_lea.vmem [#allocation3], %s516
          %519 = dma.done %s514, 512
        $region82: #{transformer_forward.17} parent=77 // pred_fallthru
          _
      $region78: #{transformer_forward.17} parent=5 // pred_fallthru
        _
    $region6: #{transformer_forward.17} parent=1 // loop_footer
      %s16 = sadd.s32 1, %s12
    $region7: #{transformer_forward.17} parent=1 // loop_footer_branch
      %11 = sbr.rel target = $region3
    $region8: #{transformer_forward.17} parent=1 // loop_exit
      _
    %520 = vsyncpa [#allocation4], 1
    %s521 = scalar_lea.sflag [#allocation4], 1
    %522 = vsyncpa %s521, 1

</llo_original>
